<compile_context>
chip_gen: v5e
topology: v5e:2x2
jax: 0.10.0
libtpu: 0.0.40
codegen_flags: <defaults>
</compile_context>

<pallas_src>
import functools

import jax
import jax.numpy as jnp
from jax.experimental import pallas as pl
from jax.experimental.pallas import tpu as pltpu

LANE = 128


def _round_up(x: int, m: int) -> int:
    return (x + m - 1) // m * m


def mlp_kernel(x_ref, w1_ref, b1_ref, w2_ref, b2_ref, w3_ref, b3_ref, o_ref,
               *, activation):
    # One grid step processes a tile of rows (nodes); all weights are resident
    # (double-buffered by BlockSpec, ~100 KB bf16 total at these sizes).
    # All matmul operands are bf16 (MXU-native); accumulation and every
    # element-wise op stays in f32.
    x = x_ref[...]                                                   # bf16

    h1 = jnp.dot(x, w1_ref[...],
                 preferred_element_type=jnp.float32) + b1_ref[...]   # f32
    h1 = jnp.maximum(h1, 0.0)                                        # F.relu

    h2 = jnp.dot(h1.astype(jnp.bfloat16), w2_ref[...],
                 preferred_element_type=jnp.float32) + b2_ref[...]
    h2 = jnp.maximum(h2, 0.0)                                        # F.relu

    # w3/b3 are zero-padded to 128 output lanes -> lane-dense result block.
    out = jnp.dot(h2.astype(jnp.bfloat16), w3_ref[...],
                  preferred_element_type=jnp.float32) + b3_ref[...]

    if activation == "sig":
        out = jax.nn.sigmoid(out)                                    # F.sigmoid
    elif activation == "tanh":
        out = jnp.tanh(out)                                          # F.tanh
    else:
        raise AssertionError(f"Undefined activation {activation}")

    # Unmasked, lane-dense (tile_m, 128) store.
    o_ref[...] = out.astype(o_ref.dtype)


def mlp_forward(x, params, *, activation="sig", tile_m=512):
    """Pallas MLP forward.

    x: [N, nfeats] float32 (or bf16) node features.
    params: (w1, b1, w2, b2, w3, b3) with weights [in, out] in bf16 and
            biases [1, out] in f32.
    Returns [N, n_target] float32.
    """
    w1, b1, w2, b2, w3, b3 = params
    N, nfeats = x.shape
    hfeats = w1.shape[1]
    n_target = w3.shape[1]

    # --- Lane-dense output: pad the last layer to a full 128-lane block. ---
    n_pad = _round_up(n_target, LANE)
    if n_pad != n_target:
        w3 = jnp.pad(w3, ((0, 0), (0, n_pad - n_target)))
        b3 = jnp.pad(b3, ((0, 0), (0, n_pad - n_target)))

    # --- Row tiling: big tiles, but keep >= 2 grid steps when possible so the
    # "parallel" row axis can be sharded across both v7x TensorCores. ---
    tile_m = min(tile_m, max(8, _round_up(max(N // 2, 1), 8)))
    n_rows = _round_up(N, tile_m)
    if n_rows != N:
        x = jnp.pad(x, ((0, n_rows - N), (0, 0)))
    x = x.astype(jnp.bfloat16)

    grid = (n_rows // tile_m,)

    # Advisory cost estimate for XLA's scheduler around this custom call.
    flops = 2 * n_rows * (nfeats * hfeats + hfeats * hfeats + hfeats * n_pad)
    bytes_accessed = (
        x.size * x.dtype.itemsize
        + sum(int(p.size) * p.dtype.itemsize for p in (w1, b1, w2, b2, w3, b3))
        + n_rows * n_pad * 4)
    cost = pl.CostEstimate(flops=flops,
                           transcendentals=n_rows * n_pad,
                           bytes_accessed=bytes_accessed)

    # x / output tiled over rows; weights & biases get the full array each step.
    # NOTE: nfeats=64 fills only half a vreg's lanes; left as-is per review
    # (small win; pad x/W1 to 128 features host-side if the layout is yours).
    in_specs = [
        pl.BlockSpec((tile_m, nfeats), lambda i: (i, 0)),
        pl.BlockSpec((nfeats, hfeats), lambda i: (0, 0)),
        pl.BlockSpec((1, hfeats), lambda i: (0, 0)),
        pl.BlockSpec((hfeats, hfeats), lambda i: (0, 0)),
        pl.BlockSpec((1, hfeats), lambda i: (0, 0)),
        pl.BlockSpec((hfeats, n_pad), lambda i: (0, 0)),
        pl.BlockSpec((1, n_pad), lambda i: (0, 0)),
    ]
    out_specs = pl.BlockSpec((tile_m, n_pad), lambda i: (i, 0))

    out_padded = pl.pallas_call(
        functools.partial(mlp_kernel, activation=activation),
        out_shape=jax.ShapeDtypeStruct((n_rows, n_pad), jnp.float32),
        grid_spec=pltpu.PrefetchScalarGridSpec(
            num_scalar_prefetch=0,
            grid=grid,
            in_specs=in_specs,
            out_specs=out_specs,
        ),
        compiler_params=pltpu.CompilerParams(
            dimension_semantics=("parallel",),
            vmem_limit_bytes=32 * 1024 * 1024,
        ),
        cost_estimate=cost,
    )(x, w1, b1, w2, b2, w3, b3)

    # Slice away padded rows and padded output lanes.
    return out_padded[:N, :n_target]


def init_linear(key, fan_in, fan_out):
    """Deterministic init mimicking torch.nn.Linear (uniform +-1/sqrt(fan_in)).

    Weight is returned as bf16 [fan_in, fan_out] (transposed vs PyTorch,
    bf16 for MXU-native matmul and halved weight DMA); bias is f32 [1, fan_out].
    """
    kw, kb = jax.random.split(key)
    bound = 1.0 / jnp.sqrt(float(fan_in))
    w = jax.random.uniform(kw, (fan_in, fan_out), jnp.float32, -bound, bound)
    b = jax.random.uniform(kb, (1, fan_out), jnp.float32, -bound, bound)
    return w.astype(jnp.bfloat16), b


def reference_forward(x, params, activation="sig"):
    """Pure-JAX reference mirroring the kernel's bf16-operand / f32-accumulate math."""
    w1, b1, w2, b2, w3, b3 = params
    xb = x.astype(jnp.bfloat16)
    h1 = jnp.maximum(
        jnp.dot(xb, w1, preferred_element_type=jnp.float32) + b1, 0.0)
    h2 = jnp.maximum(
        jnp.dot(h1.astype(jnp.bfloat16), w2,
                preferred_element_type=jnp.float32) + b2, 0.0)
    out = jnp.dot(h2.astype(jnp.bfloat16), w3,
                  preferred_element_type=jnp.float32) + b3
    if activation == "sig":
        return jax.nn.sigmoid(out)
    elif activation == "tanh":
        return jnp.tanh(out)
    raise AssertionError(f"Undefined activation {activation}")


if __name__ == "__main__":
    # Synthetic sizes: 1024 "graph nodes", nfeats=64, hfeats=128, n_target=8.
    # tile_m=512 -> 2 parallel grid steps (keeps both v7x TCs busy).
    N, nfeats, hfeats, n_target = 1024, 64, 128, 8

    key = jax.random.PRNGKey(0)
    kx, k1, k2, k3 = jax.random.split(key, 4)

    x = jax.random.normal(kx, (N, nfeats), jnp.float32)  # stands in for g.ndata['hv']
    w1, b1 = init_linear(k1, nfeats, hfeats)
    w2, b2 = init_linear(k2, hfeats, hfeats)
    w3, b3 = init_linear(k3, hfeats, n_target)
    params = (w1, b1, w2, b2, w3, b3)

    out = mlp_forward(x, params, activation="sig", tile_m=512)
    out = jax.block_until_ready(out)
    ref = reference_forward(x, params, activation="sig")
    assert out.shape == (N, n_target)
    assert jnp.allclose(out, ref, atol=1e-4, rtol=1e-4), "sigmoid path mismatch"

    # Ragged-N + tanh path (exercises row padding and the other activation).
    N2 = 200
    x2 = jax.random.normal(jax.random.PRNGKey(1), (N2, nfeats), jnp.float32)
    out2 = jax.block_until_ready(mlp_forward(x2, params, activation="tanh"))
    ref2 = reference_forward(x2, params, activation="tanh")
    assert out2.shape == (N2, n_target)
    assert jnp.allclose(out2, ref2, atol=1e-4, rtol=1e-4), "tanh path mismatch"

    print("KERNEL_OK")
</pallas_src>

<mosaic_0001>
module attributes {stable_mosaic.version = 11 : i64} {
  func.func @mlp_kernel(%arg0: i32, %arg1: memref<512x64xbf16, #tpu.memory_space<vmem>>, %arg2: memref<64x128xbf16, #tpu.memory_space<vmem>>, %arg3: memref<1x128xf32, #tpu.memory_space<vmem>>, %arg4: memref<128x128xbf16, #tpu.memory_space<vmem>>, %arg5: memref<1x128xf32, #tpu.memory_space<vmem>>, %arg6: memref<128x128xbf16, #tpu.memory_space<vmem>>, %arg7: memref<1x128xf32, #tpu.memory_space<vmem>>, %arg8: memref<512x128xf32, #tpu.memory_space<vmem>>) attributes {dimension_semantics = [#tpu.dimension_semantics<parallel>], iteration_bounds = array<i64: 2>, scalar_prefetch = 0 : i64, scratch_operands = 0 : i64, tpu.core_type = #tpu.core_type<tc>, window_params = [{transform_indices = @transform_0, window_bounds = array<i64: 512, 64>}, {pipeline_mode = #tpu.pipeline_mode<synchronous>, transform_indices = @transform_1, window_bounds = array<i64: 64, 128>}, {pipeline_mode = #tpu.pipeline_mode<synchronous>, transform_indices = @transform_2, window_bounds = array<i64: 1, 128>}, {pipeline_mode = #tpu.pipeline_mode<synchronous>, transform_indices = @transform_3, window_bounds = array<i64: 128, 128>}, {pipeline_mode = #tpu.pipeline_mode<synchronous>, transform_indices = @transform_4, window_bounds = array<i64: 1, 128>}, {pipeline_mode = #tpu.pipeline_mode<synchronous>, transform_indices = @transform_5, window_bounds = array<i64: 128, 128>}, {pipeline_mode = #tpu.pipeline_mode<synchronous>, transform_indices = @transform_6, window_bounds = array<i64: 1, 128>}, {transform_indices = @transform_7, window_bounds = array<i64: 512, 128>}]} {
    %c0 = arith.constant 0 : index
    %c0_0 = arith.constant 0 : index
    %0 = vector.load %arg1[%c0, %c0_0] : memref<512x64xbf16, #tpu.memory_space<vmem>>, vector<512x64xbf16>
    %c0_1 = arith.constant 0 : index
    %c0_2 = arith.constant 0 : index
    %1 = vector.load %arg2[%c0_1, %c0_2] : memref<64x128xbf16, #tpu.memory_space<vmem>>, vector<64x128xbf16>
    %cst = arith.constant dense<0.000000e+00> : vector<512x128xf32>
    %2 = tpu.matmul %0, %1, %cst {dimension_numbers = #tpu.dot_dimension_numbers<[1], [0], [0], [1], [0, 0, 1, 1], [], []>} : vector<512x64xbf16>, vector<64x128xbf16>, vector<512x128xf32> -> vector<512x128xf32>
    %c0_3 = arith.constant 0 : index
    %c0_4 = arith.constant 0 : index
    %3 = vector.load %arg3[%c0_3, %c0_4] : memref<1x128xf32, #tpu.memory_space<vmem>>, vector<1x128xf32>
    %4 = vector.broadcast %3 : vector<1x128xf32> to vector<512x128xf32>
    %5 = arith.addf %2, %4 : vector<512x128xf32>
    %cst_5 = arith.constant 0.000000e+00 : f32
    %6 = vector.broadcast %cst_5 : f32 to vector<512x128xf32>
    %7 = arith.maximumf %5, %6 : vector<512x128xf32>
    %8 = arith.truncf %7 : vector<512x128xf32> to vector<512x128xbf16>
    %c0_6 = arith.constant 0 : index
    %c0_7 = arith.constant 0 : index
    %9 = vector.load %arg4[%c0_6, %c0_7] : memref<128x128xbf16, #tpu.memory_space<vmem>>, vector<128x128xbf16>
    %cst_8 = arith.constant dense<0.000000e+00> : vector<512x128xf32>
    %10 = tpu.matmul %8, %9, %cst_8 {dimension_numbers = #tpu.dot_dimension_numbers<[1], [0], [0], [1], [0, 0, 1, 1], [], []>} : vector<512x128xbf16>, vector<128x128xbf16>, vector<512x128xf32> -> vector<512x128xf32>
    %c0_9 = arith.constant 0 : index
    %c0_10 = arith.constant 0 : index
    %11 = vector.load %arg5[%c0_9, %c0_10] : memref<1x128xf32, #tpu.memory_space<vmem>>, vector<1x128xf32>
    %12 = vector.broadcast %11 : vector<1x128xf32> to vector<512x128xf32>
    %13 = arith.addf %10, %12 : vector<512x128xf32>
    %cst_11 = arith.constant 0.000000e+00 : f32
    %14 = vector.broadcast %cst_11 : f32 to vector<512x128xf32>
    %15 = arith.maximumf %13, %14 : vector<512x128xf32>
    %16 = arith.truncf %15 : vector<512x128xf32> to vector<512x128xbf16>
    %c0_12 = arith.constant 0 : index
    %c0_13 = arith.constant 0 : index
    %17 = vector.load %arg6[%c0_12, %c0_13] : memref<128x128xbf16, #tpu.memory_space<vmem>>, vector<128x128xbf16>
    %cst_14 = arith.constant dense<0.000000e+00> : vector<512x128xf32>
    %18 = tpu.matmul %16, %17, %cst_14 {dimension_numbers = #tpu.dot_dimension_numbers<[1], [0], [0], [1], [0, 0, 1, 1], [], []>} : vector<512x128xbf16>, vector<128x128xbf16>, vector<512x128xf32> -> vector<512x128xf32>
    %c0_15 = arith.constant 0 : index
    %c0_16 = arith.constant 0 : index
    %19 = vector.load %arg7[%c0_15, %c0_16] : memref<1x128xf32, #tpu.memory_space<vmem>>, vector<1x128xf32>
    %20 = vector.broadcast %19 : vector<1x128xf32> to vector<512x128xf32>
    %21 = arith.addf %18, %20 : vector<512x128xf32>
    %22 = arith.negf %21 : vector<512x128xf32>
    %23 = math.exp %22 : vector<512x128xf32>
    %cst_17 = arith.constant 1.000000e+00 : f32
    %24 = vector.broadcast %cst_17 : f32 to vector<512x128xf32>
    %25 = arith.addf %24, %23 : vector<512x128xf32>
    %26 = arith.divf %24, %25 : vector<512x128xf32>
    %c0_18 = arith.constant 0 : index
    %c0_19 = arith.constant 0 : index
    %27 = vector.load %arg8[%c0_18, %c0_19] : memref<512x128xf32, #tpu.memory_space<vmem>>, vector<512x128xf32>
    tpu.vector_store %arg8[%c0_18, %c0_19], %26 {strides = array<i32>} : memref<512x128xf32, #tpu.memory_space<vmem>>, vector<512x128xf32>,
    return
  }
  func.func @transform_0(%arg0: i32) -> (i32, i32) {
    %c0_i32 = arith.constant 0 : i32
    %c0_i32_0 = arith.constant 0 : i32
    return %arg0, %c0_i32 : i32, i32
  }
  func.func @transform_1(%arg0: i32) -> (i32, i32) {
    %c0_i32 = arith.constant 0 : i32
    %c0_i32_0 = arith.constant 0 : i32
    %c0_i32_1 = arith.constant 0 : i32
    return %c0_i32, %c0_i32_0 : i32, i32
  }
  func.func @transform_2(%arg0: i32) -> (i32, i32) {
    %c0_i32 = arith.constant 0 : i32
    %c0_i32_0 = arith.constant 0 : i32
    %c0_i32_1 = arith.constant 0 : i32
    return %c0_i32, %c0_i32_0 : i32, i32
  }
  func.func @transform_3(%arg0: i32) -> (i32, i32) {
    %c0_i32 = arith.constant 0 : i32
    %c0_i32_0 = arith.constant 0 : i32
    %c0_i32_1 = arith.constant 0 : i32
    return %c0_i32, %c0_i32_0 : i32, i32
  }
  func.func @transform_4(%arg0: i32) -> (i32, i32) {
    %c0_i32 = arith.constant 0 : i32
    %c0_i32_0 = arith.constant 0 : i32
    %c0_i32_1 = arith.constant 0 : i32
    return %c0_i32, %c0_i32_0 : i32, i32
  }
  func.func @transform_5(%arg0: i32) -> (i32, i32) {
    %c0_i32 = arith.constant 0 : i32
    %c0_i32_0 = arith.constant 0 : i32
    %c0_i32_1 = arith.constant 0 : i32
    return %c0_i32, %c0_i32_0 : i32, i32
  }
  func.func @transform_6(%arg0: i32) -> (i32, i32) {
    %c0_i32 = arith.constant 0 : i32
    %c0_i32_0 = arith.constant 0 : i32
    %c0_i32_1 = arith.constant 0 : i32
    return %c0_i32, %c0_i32_0 : i32, i32
  }
  func.func @transform_7(%arg0: i32) -> (i32, i32) {
    %c0_i32 = arith.constant 0 : i32
    %c0_i32_0 = arith.constant 0 : i32
    return %arg0, %c0_i32 : i32, i32
  }
}

</mosaic_0001>

<llo_original>
// kernel: tpu_custom_call.1
$region0: #{tpu_custom_call.1}
  #allocation0 [shape = 'u32[]', space=smem, size = 0x4, offset = 0x4, fixed_abs, tag = 'smem constant byte address 0x4 - core index']
  #allocation1 [shape = 'u32[72,128]{1,0:T(1,128)}', space=vmem, size = 0x9000, scoped, tag = 'internal scratch']
  %s0 = inlined_call_operand.vmem [shape: bf16[1024,64], index: 0, kind: input, shape index: {}]
  %s1 = inlined_call_operand.vmem [shape: bf16[64,128], index: 1, kind: input, shape index: {}]
  %s2 = inlined_call_operand.vmem [shape: f32[1,128], index: 2, kind: input, shape index: {}]
  %s3 = inlined_call_operand.vmem [shape: bf16[128,128], index: 3, kind: input, shape index: {}]
  %s4 = inlined_call_operand.vmem [shape: f32[1,128], index: 4, kind: input, shape index: {}]
  %s5 = inlined_call_operand.vmem [shape: bf16[128,128], index: 5, kind: input, shape index: {}]
  %s6 = inlined_call_operand.vmem [shape: f32[1,128], index: 6, kind: input, shape index: {}]
  %s7 = inlined_call_operand.hbm [shape: f32[1024,128], index: 7, kind: output, shape index: {}]
  %s8 = sld [smem:[#allocation0]]
  $region61: #{tpu_custom_call.1} parent=0
    _
  %s10 = ssub.s32 1, %s8
  %s11 = scalar_select 0, %s10, %s8
  $region1: #{tpu_custom_call.1} parent=0
    #allocation2 [shape = 'u8[524288]{0}', space=vmem, size = 0x80000, scoped, tag = 'output window, operand 0']
    #allocation3 [shape = 's32[2]{0}', space=sflag, size = 0x8, scoped, tag = 'scoped memory for tpu_custom_call.1']
    %12 = vsyncpa [#allocation3], 0
    %s13 = scalar_lea.sflag [#allocation3], 1
    %14 = vsyncpa %s13, 0
    loop: start=0, step=1, limit=4
    $region2: #{tpu_custom_call.1} parent=1 // loop_pre_header
      _
    $region3: #{tpu_custom_call.1} parent=1 // loop_header
      %s16 = sphi 0, %s20
      %p17 = scmp.ge.s32.totalorder %s16, 4
      %s26 = sphi 0, %s28
      %s29 = sphi 0, %s26
      %s30 = sphi 0, %s29
      %s46 = sphi 0, %s30
      %s50 = sphi 0, %s50
      %s52 = sphi 0, %s50
      %s53 = sphi 0, %s52
      %s67 = sphi 0, %s53
      %s71 = sphi 0, %s71
      %s73 = sphi 0, %s71
      %s74 = sphi 0, %s73
      %s88 = sphi 0, %s74
      %s92 = sphi 0, %s92
      %s94 = sphi 0, %s92
      %s95 = sphi 0, %s94
      %s109 = sphi 0, %s95
      %s113 = sphi 0, %s113
      %s115 = sphi 0, %s113
      %s116 = sphi 0, %s115
      %s130 = sphi 0, %s116
      %s134 = sphi 0, %s134
      %s136 = sphi 0, %s134
      %s137 = sphi 0, %s136
      %s151 = sphi 0, %s137
      %s155 = sphi 0, %s155
      %s157 = sphi 0, %s155
      %s158 = sphi 0, %s157
      %s172 = sphi 0, %s158
      %s178 = sphi 0, %s180
      %s181 = sphi 0, %s178
      %s182 = sphi 0, %s181
      %s198 = sphi 0, %s182
    $region4: #{tpu_custom_call.1} parent=1 // loop_header_branch
      %19 = sbr.rel (%p17) target = $region8
    $region5: #{tpu_custom_call.1} parent=1 // loop_body
      %s21 = ssub.s32 %s16, 1
      %s22 = ssub.s32 %s16, 2
      %s23 = sadd.s32 %s16, 1
      %s24 = ssub.s32 %s16, %s23
      %p25 = scmp.eq.s32.totalorder %s24, 0
      %s27 = sadd.s32 %s26, 1
      %s28 = scalar_select %p25, %s26, %s27
      %p31 = pneg %p25
      %p32 = scmp.eq.s32.totalorder %s16, 1
      %p33 = por %p31, %p32
      %p34 = scmp.ne.s32.totalorder %s26, %s29
      %p35 = scmp.eq.s32.totalorder %s16, 0
      %p36 = por %p34, %p35
      %p37 = scmp.ne.s32.totalorder %s26, %s29
      %p38 = scmp.eq.s32.totalorder %s21, 1
      %p39 = por %p37, %p38
      %p40 = scmp.ne.s32.totalorder %s29, %s30
      %p41 = scmp.eq.s32.totalorder %s21, 0
      %p42 = por %p40, %p41
      %p43 = scmp.ne.s32.totalorder %s29, %s30
      %p44 = scmp.eq.s32.totalorder %s22, 1
      %p45 = por %p43, %p44
      %p47 = scmp.ne.s32.totalorder %s30, %s46
      %p48 = scmp.eq.s32.totalorder %s22, 0
      %p49 = por %p47, %p48
      %s51 = sadd.s32 %s50, 1
      %p54 = scmp.eq.s32.totalorder %s16, 1
      %p55 = scmp.ne.s32.totalorder %s50, %s52
      %p56 = scmp.eq.s32.totalorder %s16, 0
      %p57 = por %p55, %p56
      %p58 = scmp.ne.s32.totalorder %s50, %s52
      %p59 = scmp.eq.s32.totalorder %s21, 1
      %p60 = por %p58, %p59
      %p61 = scmp.ne.s32.totalorder %s52, %s53
      %p62 = scmp.eq.s32.totalorder %s21, 0
      %p63 = por %p61, %p62
      %p64 = scmp.ne.s32.totalorder %s52, %s53
      %p65 = scmp.eq.s32.totalorder %s22, 1
      %p66 = por %p64, %p65
      %p68 = scmp.ne.s32.totalorder %s53, %s67
      %p69 = scmp.eq.s32.totalorder %s22, 0
      %p70 = por %p68, %p69
      %s72 = sadd.s32 %s71, 1
      %p75 = scmp.eq.s32.totalorder %s16, 1
      %p76 = scmp.ne.s32.totalorder %s71, %s73
      %p77 = scmp.eq.s32.totalorder %s16, 0
      %p78 = por %p76, %p77
      %p79 = scmp.ne.s32.totalorder %s71, %s73
      %p80 = scmp.eq.s32.totalorder %s21, 1
      %p81 = por %p79, %p80
      %p82 = scmp.ne.s32.totalorder %s73, %s74
      %p83 = scmp.eq.s32.totalorder %s21, 0
      %p84 = por %p82, %p83
      %p85 = scmp.ne.s32.totalorder %s73, %s74
      %p86 = scmp.eq.s32.totalorder %s22, 1
      %p87 = por %p85, %p86
      %p89 = scmp.ne.s32.totalorder %s74, %s88
      %p90 = scmp.eq.s32.totalorder %s22, 0
      %p91 = por %p89, %p90
      %s93 = sadd.s32 %s92, 1
      %p96 = scmp.eq.s32.totalorder %s16, 1
      %p97 = scmp.ne.s32.totalorder %s92, %s94
      %p98 = scmp.eq.s32.totalorder %s16, 0
      %p99 = por %p97, %p98
      %p100 = scmp.ne.s32.totalorder %s92, %s94
      %p101 = scmp.eq.s32.totalorder %s21, 1
      %p102 = por %p100, %p101
      %p103 = scmp.ne.s32.totalorder %s94, %s95
      %p104 = scmp.eq.s32.totalorder %s21, 0
      %p105 = por %p103, %p104
      %p106 = scmp.ne.s32.totalorder %s94, %s95
      %p107 = scmp.eq.s32.totalorder %s22, 1
      %p108 = por %p106, %p107
      %p110 = scmp.ne.s32.totalorder %s95, %s109
      %p111 = scmp.eq.s32.totalorder %s22, 0
      %p112 = por %p110, %p111
      %s114 = sadd.s32 %s113, 1
      %p117 = scmp.eq.s32.totalorder %s16, 1
      %p118 = scmp.ne.s32.totalorder %s113, %s115
      %p119 = scmp.eq.s32.totalorder %s16, 0
      %p120 = por %p118, %p119
      %p121 = scmp.ne.s32.totalorder %s113, %s115
      %p122 = scmp.eq.s32.totalorder %s21, 1
      %p123 = por %p121, %p122
      %p124 = scmp.ne.s32.totalorder %s115, %s116
      %p125 = scmp.eq.s32.totalorder %s21, 0
      %p126 = por %p124, %p125
      %p127 = scmp.ne.s32.totalorder %s115, %s116
      %p128 = scmp.eq.s32.totalorder %s22, 1
      %p129 = por %p127, %p128
      %p131 = scmp.ne.s32.totalorder %s116, %s130
      %p132 = scmp.eq.s32.totalorder %s22, 0
      %p133 = por %p131, %p132
      %s135 = sadd.s32 %s134, 1
      %p138 = scmp.eq.s32.totalorder %s16, 1
      %p139 = scmp.ne.s32.totalorder %s134, %s136
      %p140 = scmp.eq.s32.totalorder %s16, 0
      %p141 = por %p139, %p140
      %p142 = scmp.ne.s32.totalorder %s134, %s136
      %p143 = scmp.eq.s32.totalorder %s21, 1
      %p144 = por %p142, %p143
      %p145 = scmp.ne.s32.totalorder %s136, %s137
      %p146 = scmp.eq.s32.totalorder %s21, 0
      %p147 = por %p145, %p146
      %p148 = scmp.ne.s32.totalorder %s136, %s137
      %p149 = scmp.eq.s32.totalorder %s22, 1
      %p150 = por %p148, %p149
      %p152 = scmp.ne.s32.totalorder %s137, %s151
      %p153 = scmp.eq.s32.totalorder %s22, 0
      %p154 = por %p152, %p153
      %s156 = sadd.s32 %s155, 1
      %p159 = scmp.eq.s32.totalorder %s16, 1
      %p160 = scmp.ne.s32.totalorder %s155, %s157
      %p161 = scmp.eq.s32.totalorder %s16, 0
      %p162 = por %p160, %p161
      %p163 = scmp.ne.s32.totalorder %s155, %s157
      %p164 = scmp.eq.s32.totalorder %s21, 1
      %p165 = por %p163, %p164
      %p166 = scmp.ne.s32.totalorder %s157, %s158
      %p167 = scmp.eq.s32.totalorder %s21, 0
      %p168 = por %p166, %p167
      %p169 = scmp.ne.s32.totalorder %s157, %s158
      %p170 = scmp.eq.s32.totalorder %s22, 1
      %p171 = por %p169, %p170
      %p173 = scmp.ne.s32.totalorder %s158, %s172
      %p174 = scmp.eq.s32.totalorder %s22, 0
      %p175 = por %p173, %p174
      %s176 = ssub.s32 %s16, %s23
      %p177 = scmp.eq.s32.totalorder %s176, 0
      %s179 = sadd.s32 %s178, 1
      %s180 = scalar_select %p177, %s178, %s179
      %p183 = pneg %p177
      %p184 = scmp.eq.s32.totalorder %s16, 1
      %p185 = por %p183, %p184
      %p186 = scmp.ne.s32.totalorder %s178, %s181
      %p187 = scmp.eq.s32.totalorder %s16, 0
      %p188 = por %p186, %p187
      %p189 = scmp.ne.s32.totalorder %s178, %s181
      %p190 = scmp.eq.s32.totalorder %s21, 1
      %p191 = por %p189, %p190
      %p192 = scmp.ne.s32.totalorder %s181, %s182
      %p193 = scmp.eq.s32.totalorder %s21, 0
      %p194 = por %p192, %p193
      %p195 = scmp.ne.s32.totalorder %s181, %s182
      %p196 = scmp.eq.s32.totalorder %s22, 1
      %p197 = por %p195, %p196
      %p199 = scmp.ne.s32.totalorder %s182, %s198
      %p200 = scmp.eq.s32.totalorder %s22, 0
      %p201 = por %p199, %p200
      %p202 = scmp.le.s32.totalorder 1, %s16
      %p203 = scmp.lt.s32.totalorder %s16, 3
      %p204 = pnand %p202, %p203
      %p205 = pneg %p204
      // Predicated region
      $region9: #{tpu_custom_call.1} parent=5 // pred_check
        _
      $region10: #{tpu_custom_call.1} parent=5 // pred_check_branch
        %207 = sbr.rel (%p204) target = $region12
      $region11: #{tpu_custom_call.1} parent=5 // pred_region
        %s208 = ssub.s32 %s16, 1
        // Predicated region
        $region13: #{tpu_custom_call.1} parent=11 // pred_check
          %p209 = pneg %p63
        $region14: #{tpu_custom_call.1} parent=11 // pred_check_branch
          %211 = sbr.rel (%p209) target = $region16
        $region15: #{tpu_custom_call.1} parent=11 // pred_region
          _
        $region16: #{tpu_custom_call.1} parent=11 // pred_fallthru
          _
        // Predicated region
        $region17: #{tpu_custom_call.1} parent=11 // pred_check
          %p212 = pneg %p84
        $region18: #{tpu_custom_call.1} parent=11 // pred_check_branch
          %214 = sbr.rel (%p212) target = $region20
        $region19: #{tpu_custom_call.1} parent=11 // pred_region
          _
        $region20: #{tpu_custom_call.1} parent=11 // pred_fallthru
          _
        // Predicated region
        $region21: #{tpu_custom_call.1} parent=11 // pred_check
          %p215 = pneg %p105
        $region22: #{tpu_custom_call.1} parent=11 // pred_check_branch
          %217 = sbr.rel (%p215) target = $region24
        $region23: #{tpu_custom_call.1} parent=11 // pred_region
          _
        $region24: #{tpu_custom_call.1} parent=11 // pred_fallthru
          _
        // Predicated region
        $region25: #{tpu_custom_call.1} parent=11 // pred_check
          %p218 = pneg %p126
        $region26: #{tpu_custom_call.1} parent=11 // pred_check_branch
          %220 = sbr.rel (%p218) target = $region28
        $region27: #{tpu_custom_call.1} parent=11 // pred_region
          _
        $region28: #{tpu_custom_call.1} parent=11 // pred_fallthru
          _
        // Predicated region
        $region29: #{tpu_custom_call.1} parent=11 // pred_check
          %p221 = pneg %p147
        $region30: #{tpu_custom_call.1} parent=11 // pred_check_branch
          %223 = sbr.rel (%p221) target = $region32
        $region31: #{tpu_custom_call.1} parent=11 // pred_region
          _
        $region32: #{tpu_custom_call.1} parent=11 // pred_fallthru
          _
        // Predicated region
        $region33: #{tpu_custom_call.1} parent=11 // pred_check
          %p224 = pneg %p168
        $region34: #{tpu_custom_call.1} parent=11 // pred_check_branch
          %226 = sbr.rel (%p224) target = $region36
        $region35: #{tpu_custom_call.1} parent=11 // pred_region
          _
        $region36: #{tpu_custom_call.1} parent=11 // pred_fallthru
          _
      $region12: #{tpu_custom_call.1} parent=5 // pred_fallthru
        _
      %p227 = scmp.lt.s32.totalorder %s16, 2
      // Predicated region
      $region37: #{tpu_custom_call.1} parent=5 // pred_check
        %p228 = pneg %p227
      $region38: #{tpu_custom_call.1} parent=5 // pred_check_branch
        %230 = sbr.rel (%p228) target = $region40
      $region39: #{tpu_custom_call.1} parent=5 // pred_region
        // Predicated region
        $region41: #{tpu_custom_call.1} parent=39 // pred_check
          %p231 = pneg %p36
        $region42: #{tpu_custom_call.1} parent=39 // pred_check_branch
          %233 = sbr.rel (%p231) target = $region44
        $region43: #{tpu_custom_call.1} parent=39 // pred_region
          %s234 = smul.u32 64, %s16
          %p235 = scmp.lt.s32.totalorder %s234, 127
          %s236 = scalar_select %p235, %s234, 127
          %s237 = smul.addr %s236, 4
          %s238 = scalar_lea.vmem %s0, %s237
          %s239 = smul.u32 64, %s16
        $region44: #{tpu_custom_call.1} parent=39 // pred_fallthru
          _
      $region40: #{tpu_custom_call.1} parent=5 // pred_fallthru
        _
      %p240 = scmp.le.s32.totalorder 1, %s16
      %p241 = scmp.lt.s32.totalorder %s16, 3
      %p242 = pnand %p240, %p241
      %p243 = pneg %p242
      // Predicated region
      $region45: #{tpu_custom_call.1} parent=5 // pred_check
        _
      $region46: #{tpu_custom_call.1} parent=5 // pred_check_branch
        %245 = sbr.rel (%p242) target = $region48
      $region47: #{tpu_custom_call.1} parent=5 // pred_region
        %s246 = ssub.s32 %s16, 1
        %s247 = smul.u32 64, %s21
        %p248 = scmp.lt.s32.totalorder %s247, 127
        %s249 = scalar_select %p248, %s247, 127
        %s250 = smul.addr %s249, 4
        %s251 = scalar_lea.vmem %s0, %s250
        %p252 = pneg %p42
        %p253 = pneg %p39
        %p254 = pneg %p63
        %p255 = pneg %p60
        %p256 = pneg %p84
        %p257 = pneg %p81
        %p258 = pneg %p105
        %p259 = pneg %p102
        %p260 = pneg %p126
        %p261 = pneg %p123
        %p262 = pneg %p147
        %p263 = pneg %p144
        %p264 = pneg %p168
        %p265 = pneg %p165
        %p266 = pneg %p194
        %p267 = pneg %p191
        %s268 = sand.u32 %s181, 1
        %s269 = scalar_lea.sflag [#allocation3], %s268
        %s270 = sand.u32 %s181, 1
        %s271 = smul.addr %s270, 512
        %s272 = scalar_lea.vmem [#allocation2], %s271
        %s273 = smul.u32 64, %s21
        %p274 = scmp.lt.s32.totalorder %s273, 127
        %s275 = scalar_select %p274, %s273, 127
        %s276 = smul.addr %s275, 4
        %s277 = scalar_lea.vmem %s0, %s276
        %s278 = smul.u32 64, %s21
        %s279 = smul.u32 64, %s21
        %v281 = vld [vmem:[%s277] sm:$0xf]
        %v282 = vld [vmem:[%s277 + $0x4] sm:$0xf]
        %v283 = vld [vmem:[%s277 + $0x8] sm:$0xf]
        %v284 = vld [vmem:[%s277 + $0xc] sm:$0xf]
        %v285 = vld [vmem:[%s277 + $0x10] sm:$0xf]
        %v286 = vld [vmem:[%s277 + $0x14] sm:$0xf]
        %v287 = vld [vmem:[%s277 + $0x18] sm:$0xf]
        %v288 = vld [vmem:[%s277 + $0x1c] sm:$0xf]
        %v289 = vld [vmem:[%s277 + $0x20] sm:$0xf]
        %v290 = vld [vmem:[%s277 + $0x24] sm:$0xf]
        %v291 = vld [vmem:[%s277 + $0x28] sm:$0xf]
        %v292 = vld [vmem:[%s277 + $0x2c] sm:$0xf]
        %v293 = vld [vmem:[%s277 + $0x30] sm:$0xf]
        %v294 = vld [vmem:[%s277 + $0x34] sm:$0xf]
        %v295 = vld [vmem:[%s277 + $0x38] sm:$0xf]
        %v296 = vld [vmem:[%s277 + $0x3c] sm:$0xf]
        %v297 = vld [vmem:[%s277 + $0x40] sm:$0xf]
        %v298 = vld [vmem:[%s277 + $0x44] sm:$0xf]
        %v299 = vld [vmem:[%s277 + $0x48] sm:$0xf]
        %v300 = vld [vmem:[%s277 + $0x4c] sm:$0xf]
        %v301 = vld [vmem:[%s277 + $0x50] sm:$0xf]
        %v302 = vld [vmem:[%s277 + $0x54] sm:$0xf]
        %v303 = vld [vmem:[%s277 + $0x58] sm:$0xf]
        %v304 = vld [vmem:[%s277 + $0x5c] sm:$0xf]
        %v305 = vld [vmem:[%s277 + $0x60] sm:$0xf]
        %v306 = vld [vmem:[%s277 + $0x64] sm:$0xf]
        %v307 = vld [vmem:[%s277 + $0x68] sm:$0xf]
        %v308 = vld [vmem:[%s277 + $0x6c] sm:$0xf]
        %v309 = vld [vmem:[%s277 + $0x70] sm:$0xf]
        %v310 = vld [vmem:[%s277 + $0x74] sm:$0xf]
        %v311 = vld [vmem:[%s277 + $0x78] sm:$0xf]
        %v312 = vld [vmem:[%s277 + $0x7c] sm:$0xf]
        %v313 = vld [vmem:[%s277 + $0x80] sm:$0xf]
        %v314 = vld [vmem:[%s277 + $0x84] sm:$0xf]
        %v315 = vld [vmem:[%s277 + $0x88] sm:$0xf]
        %v316 = vld [vmem:[%s277 + $0x8c] sm:$0xf]
        %v317 = vld [vmem:[%s277 + $0x90] sm:$0xf]
        %v318 = vld [vmem:[%s277 + $0x94] sm:$0xf]
        %v319 = vld [vmem:[%s277 + $0x98] sm:$0xf]
        %v320 = vld [vmem:[%s277 + $0x9c] sm:$0xf]
        %v321 = vld [vmem:[%s277 + $0xa0] sm:$0xf]
        %v322 = vld [vmem:[%s277 + $0xa4] sm:$0xf]
        %v323 = vld [vmem:[%s277 + $0xa8] sm:$0xf]
        %v324 = vld [vmem:[%s277 + $0xac] sm:$0xf]
        %v325 = vld [vmem:[%s277 + $0xb0] sm:$0xf]
        %v326 = vld [vmem:[%s277 + $0xb4] sm:$0xf]
        %v327 = vld [vmem:[%s277 + $0xb8] sm:$0xf]
        %v328 = vld [vmem:[%s277 + $0xbc] sm:$0xf]
        %v329 = vld [vmem:[%s277 + $0xc0] sm:$0xf]
        %v330 = vld [vmem:[%s277 + $0xc4] sm:$0xf]
        %v331 = vld [vmem:[%s277 + $0xc8] sm:$0xf]
        %v332 = vld [vmem:[%s277 + $0xcc] sm:$0xf]
        %v333 = vld [vmem:[%s277 + $0xd0] sm:$0xf]
        %v334 = vld [vmem:[%s277 + $0xd4] sm:$0xf]
        %v335 = vld [vmem:[%s277 + $0xd8] sm:$0xf]
        %v336 = vld [vmem:[%s277 + $0xdc] sm:$0xf]
        %v337 = vld [vmem:[%s277 + $0xe0] sm:$0xf]
        %v338 = vld [vmem:[%s277 + $0xe4] sm:$0xf]
        %v339 = vld [vmem:[%s277 + $0xe8] sm:$0xf]
        %v340 = vld [vmem:[%s277 + $0xec] sm:$0xf]
        %v341 = vld [vmem:[%s277 + $0xf0] sm:$0xf]
        %v342 = vld [vmem:[%s277 + $0xf4] sm:$0xf]
        %v343 = vld [vmem:[%s277 + $0xf8] sm:$0xf]
        %v344 = vld [vmem:[%s277 + $0xfc] sm:$0xf]
        %v345 = vld [vmem:[%s1] sm:$0xf]
        %v346 = vld [vmem:[%s1 + $0x4] sm:$0xf]
        %v347 = vld [vmem:[%s1 + $0x8] sm:$0xf]
        %v348 = vld [vmem:[%s1 + $0xc] sm:$0xf]
        %v349 = vld [vmem:[%s1 + $0x10] sm:$0xf]
        %v350 = vld [vmem:[%s1 + $0x14] sm:$0xf]
        %v351 = vld [vmem:[%s1 + $0x18] sm:$0xf]
        %v352 = vld [vmem:[%s1 + $0x1c] sm:$0xf]
        %v353 = vld [vmem:[%s2] sm:$0x1]
        %v355 = vperm.slane %v353, 0
        %v421 = vunpack.c.l.b16 %v281
        %v422 = vunpack.c.l.b16 %v282
        %v423 = vunpack.c.l.b16 %v283
        %v424 = vunpack.c.l.b16 %v284
        %v425 = vunpack.c.l.b16 %v285
        %v426 = vunpack.c.l.b16 %v286
        %v427 = vunpack.c.l.b16 %v287
        %v428 = vunpack.c.l.b16 %v288
        %v429 = vunpack.c.l.b16 %v289
        %v430 = vunpack.c.l.b16 %v290
        %v431 = vunpack.c.l.b16 %v291
        %v432 = vunpack.c.l.b16 %v292
        %v433 = vunpack.c.l.b16 %v293
        %v434 = vunpack.c.l.b16 %v294
        %v435 = vunpack.c.l.b16 %v295
        %v436 = vunpack.c.l.b16 %v296
        %v437 = vunpack.c.l.b16 %v297
        %v438 = vunpack.c.l.b16 %v298
        %v439 = vunpack.c.l.b16 %v299
        %v440 = vunpack.c.l.b16 %v300
        %v441 = vunpack.c.l.b16 %v301
        %v442 = vunpack.c.l.b16 %v302
        %v443 = vunpack.c.l.b16 %v303
        %v444 = vunpack.c.l.b16 %v304
        %v445 = vunpack.c.l.b16 %v305
        %v446 = vunpack.c.l.b16 %v306
        %v447 = vunpack.c.l.b16 %v307
        %v448 = vunpack.c.l.b16 %v308
        %v449 = vunpack.c.l.b16 %v309
        %v450 = vunpack.c.l.b16 %v310
        %v451 = vunpack.c.l.b16 %v311
        %v452 = vunpack.c.l.b16 %v312
        %v453 = vunpack.c.l.b16 %v313
        %v454 = vunpack.c.l.b16 %v314
        %v455 = vunpack.c.l.b16 %v315
        %v456 = vunpack.c.l.b16 %v316
        %v457 = vunpack.c.l.b16 %v317
        %v458 = vunpack.c.l.b16 %v318
        %v459 = vunpack.c.l.b16 %v319
        %v460 = vunpack.c.l.b16 %v320
        %v461 = vunpack.c.l.b16 %v321
        %v462 = vunpack.c.l.b16 %v322
        %v463 = vunpack.c.l.b16 %v323
        %v464 = vunpack.c.l.b16 %v324
        %v465 = vunpack.c.l.b16 %v325
        %v466 = vunpack.c.l.b16 %v326
        %v467 = vunpack.c.l.b16 %v327
        %v468 = vunpack.c.l.b16 %v328
        %v469 = vunpack.c.l.b16 %v329
        %v470 = vunpack.c.l.b16 %v330
        %v471 = vunpack.c.l.b16 %v331
        %v472 = vunpack.c.l.b16 %v332
        %v473 = vunpack.c.l.b16 %v333
        %v474 = vunpack.c.l.b16 %v334
        %v475 = vunpack.c.l.b16 %v335
        %v476 = vunpack.c.l.b16 %v336
        %v477 = vunpack.c.l.b16 %v337
        %v478 = vunpack.c.l.b16 %v338
        %v479 = vunpack.c.l.b16 %v339
        %v480 = vunpack.c.l.b16 %v340
        %v481 = vunpack.c.l.b16 %v341
        %v482 = vunpack.c.l.b16 %v342
        %v483 = vunpack.c.l.b16 %v343
        %v484 = vunpack.c.l.b16 %v344
        %v485 = vpack.c.b16 %v422, %v421
        %v486 = vpack.c.b16 %v424, %v423
        %v487 = vpack.c.b16 %v426, %v425
        %v488 = vpack.c.b16 %v428, %v427
        %v489 = vpack.c.b16 %v430, %v429
        %v490 = vpack.c.b16 %v432, %v431
        %v491 = vpack.c.b16 %v434, %v433
        %v492 = vpack.c.b16 %v436, %v435
        %v493 = vpack.c.b16 %v438, %v437
        %v494 = vpack.c.b16 %v440, %v439
        %v495 = vpack.c.b16 %v442, %v441
        %v496 = vpack.c.b16 %v444, %v443
        %v497 = vpack.c.b16 %v446, %v445
        %v498 = vpack.c.b16 %v448, %v447
        %v499 = vpack.c.b16 %v450, %v449
        %v500 = vpack.c.b16 %v452, %v451
        %v501 = vpack.c.b16 %v454, %v453
        %v502 = vpack.c.b16 %v456, %v455
        %v503 = vpack.c.b16 %v458, %v457
        %v504 = vpack.c.b16 %v460, %v459
        %v505 = vpack.c.b16 %v462, %v461
        %v506 = vpack.c.b16 %v464, %v463
        %v507 = vpack.c.b16 %v466, %v465
        %v508 = vpack.c.b16 %v468, %v467
        %v509 = vpack.c.b16 %v470, %v469
        %v510 = vpack.c.b16 %v472, %v471
        %v511 = vpack.c.b16 %v474, %v473
        %v512 = vpack.c.b16 %v476, %v475
        %v513 = vpack.c.b16 %v478, %v477
        %v514 = vpack.c.b16 %v480, %v479
        %v515 = vpack.c.b16 %v482, %v481
        %v516 = vpack.c.b16 %v484, %v483
        %v525 = vunpack.c.l.b16 %v345
        %v526 = vunpack.c.l.b16 %v346
        %v527 = vunpack.c.l.b16 %v347
        %v528 = vunpack.c.l.b16 %v348
        %v529 = vunpack.c.l.b16 %v349
        %v530 = vunpack.c.l.b16 %v350
        %v531 = vunpack.c.l.b16 %v351
        %v532 = vunpack.c.l.b16 %v352
        %v533 = vpack.c.b16 %v526, %v525
        %v534 = vpack.c.b16 %v528, %v527
        %v535 = vpack.c.b16 %v530, %v529
        %v536 = vpack.c.b16 %v532, %v531
        %vm541 = vcmask 523264
        %v543 = vsel %vm541, %v485, 0
        %v546 = vsel %vm541, %v486, 0
        %v549 = vsel %vm541, %v487, 0
        %v552 = vsel %vm541, %v488, 0
        %v555 = vsel %vm541, %v489, 0
        %v558 = vsel %vm541, %v490, 0
        %v561 = vsel %vm541, %v491, 0
        %v564 = vsel %vm541, %v492, 0
        %v567 = vsel %vm541, %v493, 0
        %v570 = vsel %vm541, %v494, 0
        %v573 = vsel %vm541, %v495, 0
        %v576 = vsel %vm541, %v496, 0
        %v579 = vsel %vm541, %v497, 0
        %v582 = vsel %vm541, %v498, 0
        %v585 = vsel %vm541, %v499, 0
        %v588 = vsel %vm541, %v500, 0
        %v591 = vsel %vm541, %v501, 0
        %v594 = vsel %vm541, %v502, 0
        %v597 = vsel %vm541, %v503, 0
        %v600 = vsel %vm541, %v504, 0
        %v603 = vsel %vm541, %v505, 0
        %v606 = vsel %vm541, %v506, 0
        %v609 = vsel %vm541, %v507, 0
        %v612 = vsel %vm541, %v508, 0
        %v615 = vsel %vm541, %v509, 0
        %v618 = vsel %vm541, %v510, 0
        %v621 = vsel %vm541, %v511, 0
        %v624 = vsel %vm541, %v512, 0
        %v627 = vsel %vm541, %v513, 0
        %v630 = vsel %vm541, %v514, 0
        %v633 = vsel %vm541, %v515, 0
        %v636 = vsel %vm541, %v516, 0
        %638 = vmatpush.bf16.msra.mxu0 0
        %639 = vmatpush.bf16.msra.mxu0 0
        %640 = vmatpush.bf16.msra.mxu0 0
        %641 = vmatpush.bf16.msra.mxu0 0
        %642 = vmatpush.bf16.msra.mxu0 %v536
        %643 = vmatpush.bf16.msra.mxu0 %v535
        %644 = vmatpush.bf16.msra.mxu0 %v534
        %645 = vmatpush.bf16.msra.mxu0 %v533
        %646 = vmatmul.bf16.gmra.mxu0 %v543
        %v647 = vpop.f32.mrf.mxu0
        %v648 = vadd.f32 %v355, %v647
        %v649 = vpop.f32.mrf.mxu0
        %v650 = vadd.f32 %v355, %v649
        %651 = vmatmul.bf16.gmra.mxu0 %v546
        %v652 = vpop.f32.mrf.mxu0
        %v653 = vadd.f32 %v355, %v652
        %v654 = vpop.f32.mrf.mxu0
        %v655 = vadd.f32 %v355, %v654
        %656 = vmatmul.bf16.gmra.mxu0 %v549
        %v657 = vpop.f32.mrf.mxu0
        %v658 = vadd.f32 %v355, %v657
        %v659 = vpop.f32.mrf.mxu0
        %v660 = vadd.f32 %v355, %v659
        %661 = vmatmul.bf16.gmra.mxu0 %v552
        %v662 = vpop.f32.mrf.mxu0
        %v663 = vadd.f32 %v355, %v662
        %v664 = vpop.f32.mrf.mxu0
        %v665 = vadd.f32 %v355, %v664
        %666 = vmatmul.bf16.gmra.mxu0 %v555
        %v667 = vpop.f32.mrf.mxu0
        %v668 = vadd.f32 %v355, %v667
        %v669 = vpop.f32.mrf.mxu0
        %v670 = vadd.f32 %v355, %v669
        %671 = vmatmul.bf16.gmra.mxu0 %v558
        %v672 = vpop.f32.mrf.mxu0
        %v673 = vadd.f32 %v355, %v672
        %v674 = vpop.f32.mrf.mxu0
        %v675 = vadd.f32 %v355, %v674
        %676 = vmatmul.bf16.gmra.mxu0 %v561
        %v677 = vpop.f32.mrf.mxu0
        %v678 = vadd.f32 %v355, %v677
        %v679 = vpop.f32.mrf.mxu0
        %v680 = vadd.f32 %v355, %v679
        %681 = vmatmul.bf16.gmra.mxu0 %v564
        %v682 = vpop.f32.mrf.mxu0
        %v683 = vadd.f32 %v355, %v682
        %v684 = vpop.f32.mrf.mxu0
        %v685 = vadd.f32 %v355, %v684
        %686 = vmatmul.bf16.gmra.mxu0 %v567
        %v687 = vpop.f32.mrf.mxu0
        %v688 = vadd.f32 %v355, %v687
        %v689 = vpop.f32.mrf.mxu0
        %v690 = vadd.f32 %v355, %v689
        %691 = vmatmul.bf16.gmra.mxu0 %v570
        %v692 = vpop.f32.mrf.mxu0
        %v693 = vadd.f32 %v355, %v692
        %v694 = vpop.f32.mrf.mxu0
        %v695 = vadd.f32 %v355, %v694
        %696 = vmatmul.bf16.gmra.mxu0 %v573
        %v697 = vpop.f32.mrf.mxu0
        %v698 = vadd.f32 %v355, %v697
        %v699 = vpop.f32.mrf.mxu0
        %v700 = vadd.f32 %v355, %v699
        %701 = vmatmul.bf16.gmra.mxu0 %v576
        %v702 = vpop.f32.mrf.mxu0
        %v703 = vadd.f32 %v355, %v702
        %v704 = vpop.f32.mrf.mxu0
        %v705 = vadd.f32 %v355, %v704
        %706 = vmatmul.bf16.gmra.mxu0 %v579
        %v707 = vpop.f32.mrf.mxu0
        %v708 = vadd.f32 %v355, %v707
        %v709 = vpop.f32.mrf.mxu0
        %v710 = vadd.f32 %v355, %v709
        %711 = vmatmul.bf16.gmra.mxu0 %v582
        %v712 = vpop.f32.mrf.mxu0
        %v713 = vadd.f32 %v355, %v712
        %v714 = vpop.f32.mrf.mxu0
        %v715 = vadd.f32 %v355, %v714
        %716 = vmatmul.bf16.gmra.mxu0 %v585
        %v717 = vpop.f32.mrf.mxu0
        %v718 = vadd.f32 %v355, %v717
        %v719 = vpop.f32.mrf.mxu0
        %v720 = vadd.f32 %v355, %v719
        %721 = vmatmul.bf16.gmra.mxu0 %v588
        %v722 = vpop.f32.mrf.mxu0
        %v723 = vadd.f32 %v355, %v722
        %v724 = vpop.f32.mrf.mxu0
        %v725 = vadd.f32 %v355, %v724
        %726 = vmatmul.bf16.gmra.mxu0 %v591
        %v727 = vpop.f32.mrf.mxu0
        %v728 = vadd.f32 %v355, %v727
        %v729 = vpop.f32.mrf.mxu0
        %v730 = vadd.f32 %v355, %v729
        %731 = vmatmul.bf16.gmra.mxu0 %v594
        %v732 = vpop.f32.mrf.mxu0
        %v733 = vadd.f32 %v355, %v732
        %v734 = vpop.f32.mrf.mxu0
        %v735 = vadd.f32 %v355, %v734
        %736 = vmatmul.bf16.gmra.mxu0 %v597
        %v737 = vpop.f32.mrf.mxu0
        %v738 = vadd.f32 %v355, %v737
        %v739 = vpop.f32.mrf.mxu0
        %v740 = vadd.f32 %v355, %v739
        %741 = vmatmul.bf16.gmra.mxu0 %v600
        %v742 = vpop.f32.mrf.mxu0
        %v743 = vadd.f32 %v355, %v742
        %v744 = vpop.f32.mrf.mxu0
        %v745 = vadd.f32 %v355, %v744
        %746 = vmatmul.bf16.gmra.mxu0 %v603
        %v747 = vpop.f32.mrf.mxu0
        %v748 = vadd.f32 %v355, %v747
        %v749 = vpop.f32.mrf.mxu0
        %v750 = vadd.f32 %v355, %v749
        %751 = vmatmul.bf16.gmra.mxu0 %v606
        %v752 = vpop.f32.mrf.mxu0
        %v753 = vadd.f32 %v355, %v752
        %v754 = vpop.f32.mrf.mxu0
        %v755 = vadd.f32 %v355, %v754
        %756 = vmatmul.bf16.gmra.mxu0 %v609
        %v757 = vpop.f32.mrf.mxu0
        %v758 = vadd.f32 %v355, %v757
        %v759 = vpop.f32.mrf.mxu0
        %v760 = vadd.f32 %v355, %v759
        %761 = vmatmul.bf16.gmra.mxu0 %v612
        %v762 = vpop.f32.mrf.mxu0
        %v763 = vadd.f32 %v355, %v762
        %v764 = vpop.f32.mrf.mxu0
        %v765 = vadd.f32 %v355, %v764
        %766 = vmatmul.bf16.gmra.mxu0 %v615
        %v767 = vpop.f32.mrf.mxu0
        %v768 = vadd.f32 %v355, %v767
        %v769 = vpop.f32.mrf.mxu0
        %v770 = vadd.f32 %v355, %v769
        %771 = vmatmul.bf16.gmra.mxu0 %v618
        %v772 = vpop.f32.mrf.mxu0
        %v773 = vadd.f32 %v355, %v772
        %v774 = vpop.f32.mrf.mxu0
        %v775 = vadd.f32 %v355, %v774
        %776 = vmatmul.bf16.gmra.mxu0 %v621
        %v777 = vpop.f32.mrf.mxu0
        %v778 = vadd.f32 %v355, %v777
        %v779 = vpop.f32.mrf.mxu0
        %v780 = vadd.f32 %v355, %v779
        %781 = vmatmul.bf16.gmra.mxu0 %v624
        %v782 = vpop.f32.mrf.mxu0
        %v783 = vadd.f32 %v355, %v782
        %v784 = vpop.f32.mrf.mxu0
        %v785 = vadd.f32 %v355, %v784
        %786 = vmatmul.bf16.gmra.mxu0 %v627
        %v787 = vpop.f32.mrf.mxu0
        %v788 = vadd.f32 %v355, %v787
        %v789 = vpop.f32.mrf.mxu0
        %v790 = vadd.f32 %v355, %v789
        %791 = vmatmul.bf16.gmra.mxu0 %v630
        %v792 = vpop.f32.mrf.mxu0
        %v793 = vadd.f32 %v355, %v792
        %v794 = vpop.f32.mrf.mxu0
        %v795 = vadd.f32 %v355, %v794
        %796 = vmatmul.bf16.gmra.mxu0 %v633
        %v797 = vpop.f32.mrf.mxu0
        %v798 = vadd.f32 %v355, %v797
        %v799 = vpop.f32.mrf.mxu0
        %v800 = vadd.f32 %v355, %v799
        %801 = vmatmul.bf16.gmra.mxu0 %v636
        %v802 = vpop.f32.mrf.mxu0
        %v803 = vadd.f32 %v355, %v802
        %v804 = vpop.f32.mrf.mxu0
        %v805 = vadd.f32 %v355, %v804
        %806 = vdwg.mxu0
        %v807 = vmax.f32 %v648, 0.0
        %v808 = vmax.f32 %v650, 0.0
        %v809 = vmax.f32 %v653, 0.0
        %v810 = vmax.f32 %v655, 0.0
        %v811 = vmax.f32 %v658, 0.0
        %v812 = vmax.f32 %v660, 0.0
        %v813 = vmax.f32 %v663, 0.0
        %v814 = vmax.f32 %v665, 0.0
        %v815 = vmax.f32 %v668, 0.0
        %v816 = vmax.f32 %v670, 0.0
        %v817 = vmax.f32 %v673, 0.0
        %v818 = vmax.f32 %v675, 0.0
        %v819 = vmax.f32 %v678, 0.0
        %v820 = vmax.f32 %v680, 0.0
        %v821 = vmax.f32 %v683, 0.0
        %v822 = vmax.f32 %v685, 0.0
        %v823 = vmax.f32 %v688, 0.0
        %v824 = vmax.f32 %v690, 0.0
        %v825 = vmax.f32 %v693, 0.0
        %v826 = vmax.f32 %v695, 0.0
        %v827 = vmax.f32 %v698, 0.0
        %v828 = vmax.f32 %v700, 0.0
        %v829 = vmax.f32 %v703, 0.0
        %v830 = vmax.f32 %v705, 0.0
        %v831 = vmax.f32 %v708, 0.0
        %v832 = vmax.f32 %v710, 0.0
        %v833 = vmax.f32 %v713, 0.0
        %v834 = vmax.f32 %v715, 0.0
        %v835 = vmax.f32 %v718, 0.0
        %v836 = vmax.f32 %v720, 0.0
        %v837 = vmax.f32 %v723, 0.0
        %v838 = vmax.f32 %v725, 0.0
        %v839 = vmax.f32 %v728, 0.0
        %v840 = vmax.f32 %v730, 0.0
        %v841 = vmax.f32 %v733, 0.0
        %v842 = vmax.f32 %v735, 0.0
        %v843 = vmax.f32 %v738, 0.0
        %v844 = vmax.f32 %v740, 0.0
        %v845 = vmax.f32 %v743, 0.0
        %v846 = vmax.f32 %v745, 0.0
        %v847 = vmax.f32 %v748, 0.0
        %v848 = vmax.f32 %v750, 0.0
        %v849 = vmax.f32 %v753, 0.0
        %v850 = vmax.f32 %v755, 0.0
        %v851 = vmax.f32 %v758, 0.0
        %v852 = vmax.f32 %v760, 0.0
        %v853 = vmax.f32 %v763, 0.0
        %v854 = vmax.f32 %v765, 0.0
        %v855 = vmax.f32 %v768, 0.0
        %v856 = vmax.f32 %v770, 0.0
        %v857 = vmax.f32 %v773, 0.0
        %v858 = vmax.f32 %v775, 0.0
        %v859 = vmax.f32 %v778, 0.0
        %v860 = vmax.f32 %v780, 0.0
        %v861 = vmax.f32 %v783, 0.0
        %v862 = vmax.f32 %v785, 0.0
        %v863 = vmax.f32 %v788, 0.0
        %v864 = vmax.f32 %v790, 0.0
        %v865 = vmax.f32 %v793, 0.0
        %v866 = vmax.f32 %v795, 0.0
        %v867 = vmax.f32 %v798, 0.0
        %v868 = vmax.f32 %v800, 0.0
        %v869 = vmax.f32 %v803, 0.0
        %v870 = vmax.f32 %v805, 0.0
        %v871 = vpack.c.bf16 %v808, %v807
        %v872 = vpack.c.bf16 %v810, %v809
        %v873 = vpack.c.bf16 %v812, %v811
        %v874 = vpack.c.bf16 %v814, %v813
        %v875 = vpack.c.bf16 %v816, %v815
        %v876 = vpack.c.bf16 %v818, %v817
        %v877 = vpack.c.bf16 %v820, %v819
        %v878 = vpack.c.bf16 %v822, %v821
        %v879 = vpack.c.bf16 %v824, %v823
        %v880 = vpack.c.bf16 %v826, %v825
        %v881 = vpack.c.bf16 %v828, %v827
        %v882 = vpack.c.bf16 %v830, %v829
        %v883 = vpack.c.bf16 %v832, %v831
        %v884 = vpack.c.bf16 %v834, %v833
        %v885 = vpack.c.bf16 %v836, %v835
        %v886 = vpack.c.bf16 %v838, %v837
        %v887 = vpack.c.bf16 %v840, %v839
        %v888 = vpack.c.bf16 %v842, %v841
        %v889 = vpack.c.bf16 %v844, %v843
        %v890 = vpack.c.bf16 %v846, %v845
        %v891 = vpack.c.bf16 %v848, %v847
        %v892 = vpack.c.bf16 %v850, %v849
        %v893 = vpack.c.bf16 %v852, %v851
        %v894 = vpack.c.bf16 %v854, %v853
        %v895 = vpack.c.bf16 %v856, %v855
        %v896 = vpack.c.bf16 %v858, %v857
        %v897 = vpack.c.bf16 %v860, %v859
        %v898 = vpack.c.bf16 %v862, %v861
        %v899 = vpack.c.bf16 %v864, %v863
        %v900 = vpack.c.bf16 %v866, %v865
        %v901 = vpack.c.bf16 %v868, %v867
        %v902 = vpack.c.bf16 %v870, %v869
        %v903 = vld [vmem:[%s3] sm:$0xf]
        %v904 = vld [vmem:[%s3 + $0x4] sm:$0xf]
        %v905 = vld [vmem:[%s3 + $0x8] sm:$0xf]
        %v906 = vld [vmem:[%s3 + $0xc] sm:$0xf]
        %v907 = vld [vmem:[%s3 + $0x10] sm:$0xf]
        %v908 = vld [vmem:[%s3 + $0x14] sm:$0xf]
        %v909 = vld [vmem:[%s3 + $0x18] sm:$0xf]
        %v910 = vld [vmem:[%s3 + $0x1c] sm:$0xf]
        %v911 = vld [vmem:[%s3 + $0x20] sm:$0xf]
        %v912 = vld [vmem:[%s3 + $0x24] sm:$0xf]
        %v913 = vld [vmem:[%s3 + $0x28] sm:$0xf]
        %v914 = vld [vmem:[%s3 + $0x2c] sm:$0xf]
        %v915 = vld [vmem:[%s3 + $0x30] sm:$0xf]
        %v916 = vld [vmem:[%s3 + $0x34] sm:$0xf]
        %v917 = vld [vmem:[%s3 + $0x38] sm:$0xf]
        %v918 = vld [vmem:[%s3 + $0x3c] sm:$0xf]
        %v919 = vld [vmem:[%s4] sm:$0x1]
        %v921 = vperm.slane %v919, 0
        %v939 = vunpack.c.l.b16 %v903
        %v940 = vunpack.c.l.b16 %v904
        %v941 = vunpack.c.l.b16 %v905
        %v942 = vunpack.c.l.b16 %v906
        %v943 = vunpack.c.l.b16 %v907
        %v944 = vunpack.c.l.b16 %v908
        %v945 = vunpack.c.l.b16 %v909
        %v946 = vunpack.c.l.b16 %v910
        %v947 = vunpack.c.l.b16 %v911
        %v948 = vunpack.c.l.b16 %v912
        %v949 = vunpack.c.l.b16 %v913
        %v950 = vunpack.c.l.b16 %v914
        %v951 = vunpack.c.l.b16 %v915
        %v952 = vunpack.c.l.b16 %v916
        %v953 = vunpack.c.l.b16 %v917
        %v954 = vunpack.c.l.b16 %v918
        %v955 = vpack.c.b16 %v940, %v939
        %v956 = vpack.c.b16 %v942, %v941
        %v957 = vpack.c.b16 %v944, %v943
        %v958 = vpack.c.b16 %v946, %v945
        %v959 = vpack.c.b16 %v948, %v947
        %v960 = vpack.c.b16 %v950, %v949
        %v961 = vpack.c.b16 %v952, %v951
        %v962 = vpack.c.b16 %v954, %v953
        %971 = vmatpush.bf16.msra.mxu0 %v962
        %972 = vmatpush.bf16.msra.mxu0 %v961
        %973 = vmatpush.bf16.msra.mxu0 %v960
        %974 = vmatpush.bf16.msra.mxu0 %v959
        %975 = vmatpush.bf16.msra.mxu0 %v958
        %976 = vmatpush.bf16.msra.mxu0 %v957
        %977 = vmatpush.bf16.msra.mxu0 %v956
        %978 = vmatpush.bf16.msra.mxu0 %v955
        %979 = vmatmul.bf16.gmra.mxu0 %v871
        %v980 = vpop.f32.mrf.mxu0
        %v981 = vadd.f32 %v921, %v980
        %v982 = vpop.f32.mrf.mxu0
        %v983 = vadd.f32 %v921, %v982
        %984 = vmatmul.bf16.gmra.mxu0 %v872
        %v985 = vpop.f32.mrf.mxu0
        %v986 = vadd.f32 %v921, %v985
        %v987 = vpop.f32.mrf.mxu0
        %v988 = vadd.f32 %v921, %v987
        %989 = vmatmul.bf16.gmra.mxu0 %v873
        %v990 = vpop.f32.mrf.mxu0
        %v991 = vadd.f32 %v921, %v990
        %v992 = vpop.f32.mrf.mxu0
        %v993 = vadd.f32 %v921, %v992
        %994 = vmatmul.bf16.gmra.mxu0 %v874
        %v995 = vpop.f32.mrf.mxu0
        %v996 = vadd.f32 %v921, %v995
        %v997 = vpop.f32.mrf.mxu0
        %v998 = vadd.f32 %v921, %v997
        %999 = vmatmul.bf16.gmra.mxu0 %v875
        %v1000 = vpop.f32.mrf.mxu0
        %v1001 = vadd.f32 %v921, %v1000
        %v1002 = vpop.f32.mrf.mxu0
        %v1003 = vadd.f32 %v921, %v1002
        %1004 = vmatmul.bf16.gmra.mxu0 %v876
        %v1005 = vpop.f32.mrf.mxu0
        %v1006 = vadd.f32 %v921, %v1005
        %v1007 = vpop.f32.mrf.mxu0
        %v1008 = vadd.f32 %v921, %v1007
        %1009 = vmatmul.bf16.gmra.mxu0 %v877
        %v1010 = vpop.f32.mrf.mxu0
        %v1011 = vadd.f32 %v921, %v1010
        %v1012 = vpop.f32.mrf.mxu0
        %v1013 = vadd.f32 %v921, %v1012
        %1014 = vmatmul.bf16.gmra.mxu0 %v878
        %v1015 = vpop.f32.mrf.mxu0
        %v1016 = vadd.f32 %v921, %v1015
        %v1017 = vpop.f32.mrf.mxu0
        %v1018 = vadd.f32 %v921, %v1017
        %1019 = vmatmul.bf16.gmra.mxu0 %v879
        %v1020 = vpop.f32.mrf.mxu0
        %v1021 = vadd.f32 %v921, %v1020
        %v1022 = vpop.f32.mrf.mxu0
        %v1023 = vadd.f32 %v921, %v1022
        %1024 = vmatmul.bf16.gmra.mxu0 %v880
        %v1025 = vpop.f32.mrf.mxu0
        %v1026 = vadd.f32 %v921, %v1025
        %v1027 = vpop.f32.mrf.mxu0
        %v1028 = vadd.f32 %v921, %v1027
        %1029 = vmatmul.bf16.gmra.mxu0 %v881
        %v1030 = vpop.f32.mrf.mxu0
        %v1031 = vadd.f32 %v921, %v1030
        %v1032 = vpop.f32.mrf.mxu0
        %v1033 = vadd.f32 %v921, %v1032
        %1034 = vmatmul.bf16.gmra.mxu0 %v882
        %v1035 = vpop.f32.mrf.mxu0
        %v1036 = vadd.f32 %v921, %v1035
        %v1037 = vpop.f32.mrf.mxu0
        %v1038 = vadd.f32 %v921, %v1037
        %1039 = vmatmul.bf16.gmra.mxu0 %v883
        %v1040 = vpop.f32.mrf.mxu0
        %v1041 = vadd.f32 %v921, %v1040
        %v1042 = vpop.f32.mrf.mxu0
        %v1043 = vadd.f32 %v921, %v1042
        %1044 = vmatmul.bf16.gmra.mxu0 %v884
        %v1045 = vpop.f32.mrf.mxu0
        %v1046 = vadd.f32 %v921, %v1045
        %v1047 = vpop.f32.mrf.mxu0
        %v1048 = vadd.f32 %v921, %v1047
        %1049 = vmatmul.bf16.gmra.mxu0 %v885
        %v1050 = vpop.f32.mrf.mxu0
        %v1051 = vadd.f32 %v921, %v1050
        %v1052 = vpop.f32.mrf.mxu0
        %v1053 = vadd.f32 %v921, %v1052
        %1054 = vmatmul.bf16.gmra.mxu0 %v886
        %v1055 = vpop.f32.mrf.mxu0
        %v1056 = vadd.f32 %v921, %v1055
        %v1057 = vpop.f32.mrf.mxu0
        %v1058 = vadd.f32 %v921, %v1057
        %1059 = vmatmul.bf16.gmra.mxu0 %v887
        %v1060 = vpop.f32.mrf.mxu0
        %v1061 = vadd.f32 %v921, %v1060
        %v1062 = vpop.f32.mrf.mxu0
        %v1063 = vadd.f32 %v921, %v1062
        %1064 = vmatmul.bf16.gmra.mxu0 %v888
        %v1065 = vpop.f32.mrf.mxu0
        %v1066 = vadd.f32 %v921, %v1065
        %v1067 = vpop.f32.mrf.mxu0
        %v1068 = vadd.f32 %v921, %v1067
        %1069 = vmatmul.bf16.gmra.mxu0 %v889
        %v1070 = vpop.f32.mrf.mxu0
        %v1071 = vadd.f32 %v921, %v1070
        %v1072 = vpop.f32.mrf.mxu0
        %v1073 = vadd.f32 %v921, %v1072
        %1074 = vmatmul.bf16.gmra.mxu0 %v890
        %v1075 = vpop.f32.mrf.mxu0
        %v1076 = vadd.f32 %v921, %v1075
        %v1077 = vpop.f32.mrf.mxu0
        %v1078 = vadd.f32 %v921, %v1077
        %1079 = vmatmul.bf16.gmra.mxu0 %v891
        %v1080 = vpop.f32.mrf.mxu0
        %v1081 = vadd.f32 %v921, %v1080
        %v1082 = vpop.f32.mrf.mxu0
        %v1083 = vadd.f32 %v921, %v1082
        %1084 = vmatmul.bf16.gmra.mxu0 %v892
        %v1085 = vpop.f32.mrf.mxu0
        %v1086 = vadd.f32 %v921, %v1085
        %v1087 = vpop.f32.mrf.mxu0
        %v1088 = vadd.f32 %v921, %v1087
        %1089 = vmatmul.bf16.gmra.mxu0 %v893
        %v1090 = vpop.f32.mrf.mxu0
        %v1091 = vadd.f32 %v921, %v1090
        %v1092 = vpop.f32.mrf.mxu0
        %v1093 = vadd.f32 %v921, %v1092
        %1094 = vmatmul.bf16.gmra.mxu0 %v894
        %v1095 = vpop.f32.mrf.mxu0
        %v1096 = vadd.f32 %v921, %v1095
        %v1097 = vpop.f32.mrf.mxu0
        %v1098 = vadd.f32 %v921, %v1097
        %1099 = vmatmul.bf16.gmra.mxu0 %v895
        %v1100 = vpop.f32.mrf.mxu0
        %v1101 = vadd.f32 %v921, %v1100
        %v1102 = vpop.f32.mrf.mxu0
        %v1103 = vadd.f32 %v921, %v1102
        %1104 = vmatmul.bf16.gmra.mxu0 %v896
        %v1105 = vpop.f32.mrf.mxu0
        %v1106 = vadd.f32 %v921, %v1105
        %v1107 = vpop.f32.mrf.mxu0
        %v1108 = vadd.f32 %v921, %v1107
        %1109 = vmatmul.bf16.gmra.mxu0 %v897
        %v1110 = vpop.f32.mrf.mxu0
        %v1111 = vadd.f32 %v921, %v1110
        %v1112 = vpop.f32.mrf.mxu0
        %v1113 = vadd.f32 %v921, %v1112
        %1114 = vmatmul.bf16.gmra.mxu0 %v898
        %v1115 = vpop.f32.mrf.mxu0
        %v1116 = vadd.f32 %v921, %v1115
        %v1117 = vpop.f32.mrf.mxu0
        %v1118 = vadd.f32 %v921, %v1117
        %1119 = vmatmul.bf16.gmra.mxu0 %v899
        %v1120 = vpop.f32.mrf.mxu0
        %v1121 = vadd.f32 %v921, %v1120
        %v1122 = vpop.f32.mrf.mxu0
        %v1123 = vadd.f32 %v921, %v1122
        %1124 = vmatmul.bf16.gmra.mxu0 %v900
        %v1125 = vpop.f32.mrf.mxu0
        %v1126 = vadd.f32 %v921, %v1125
        %v1127 = vpop.f32.mrf.mxu0
        %v1128 = vadd.f32 %v921, %v1127
        %1129 = vmatmul.bf16.gmra.mxu0 %v901
        %v1130 = vpop.f32.mrf.mxu0
        %v1131 = vadd.f32 %v921, %v1130
        %v1132 = vpop.f32.mrf.mxu0
        %v1133 = vadd.f32 %v921, %v1132
        %1134 = vmatmul.bf16.gmra.mxu0 %v902
        %v1135 = vpop.f32.mrf.mxu0
        %v1136 = vadd.f32 %v921, %v1135
        %v1137 = vpop.f32.mrf.mxu0
        %v1138 = vadd.f32 %v921, %v1137
        %1139 = vdwg.mxu0
        %v1140 = vmax.f32 %v981, 0.0
        %v1141 = vmax.f32 %v983, 0.0
        %v1142 = vmax.f32 %v986, 0.0
        %v1143 = vmax.f32 %v988, 0.0
        %v1144 = vmax.f32 %v991, 0.0
        %v1145 = vmax.f32 %v993, 0.0
        %v1146 = vmax.f32 %v996, 0.0
        %v1147 = vmax.f32 %v998, 0.0
        %v1148 = vmax.f32 %v1001, 0.0
        %v1149 = vmax.f32 %v1003, 0.0
        %v1150 = vmax.f32 %v1006, 0.0
        %v1151 = vmax.f32 %v1008, 0.0
        %v1152 = vmax.f32 %v1011, 0.0
        %v1153 = vmax.f32 %v1013, 0.0
        %v1154 = vmax.f32 %v1016, 0.0
        %v1155 = vmax.f32 %v1018, 0.0
        %v1156 = vmax.f32 %v1021, 0.0
        %v1157 = vmax.f32 %v1023, 0.0
        %v1158 = vmax.f32 %v1026, 0.0
        %v1159 = vmax.f32 %v1028, 0.0
        %v1160 = vmax.f32 %v1031, 0.0
        %v1161 = vmax.f32 %v1033, 0.0
        %v1162 = vmax.f32 %v1036, 0.0
        %v1163 = vmax.f32 %v1038, 0.0
        %v1164 = vmax.f32 %v1041, 0.0
        %v1165 = vmax.f32 %v1043, 0.0
        %v1166 = vmax.f32 %v1046, 0.0
        %v1167 = vmax.f32 %v1048, 0.0
        %v1168 = vmax.f32 %v1051, 0.0
        %v1169 = vmax.f32 %v1053, 0.0
        %v1170 = vmax.f32 %v1056, 0.0
        %v1171 = vmax.f32 %v1058, 0.0
        %v1172 = vmax.f32 %v1061, 0.0
        %v1173 = vmax.f32 %v1063, 0.0
        %v1174 = vmax.f32 %v1066, 0.0
        %v1175 = vmax.f32 %v1068, 0.0
        %v1176 = vmax.f32 %v1071, 0.0
        %v1177 = vmax.f32 %v1073, 0.0
        %v1178 = vmax.f32 %v1076, 0.0
        %v1179 = vmax.f32 %v1078, 0.0
        %v1180 = vmax.f32 %v1081, 0.0
        %v1181 = vmax.f32 %v1083, 0.0
        %v1182 = vmax.f32 %v1086, 0.0
        %v1183 = vmax.f32 %v1088, 0.0
        %v1184 = vmax.f32 %v1091, 0.0
        %v1185 = vmax.f32 %v1093, 0.0
        %v1186 = vmax.f32 %v1096, 0.0
        %v1187 = vmax.f32 %v1098, 0.0
        %v1188 = vmax.f32 %v1101, 0.0
        %v1189 = vmax.f32 %v1103, 0.0
        %v1190 = vmax.f32 %v1106, 0.0
        %v1191 = vmax.f32 %v1108, 0.0
        %v1192 = vmax.f32 %v1111, 0.0
        %v1193 = vmax.f32 %v1113, 0.0
        %v1194 = vmax.f32 %v1116, 0.0
        %v1195 = vmax.f32 %v1118, 0.0
        %v1196 = vmax.f32 %v1121, 0.0
        %v1197 = vmax.f32 %v1123, 0.0
        %v1198 = vmax.f32 %v1126, 0.0
        %v1199 = vmax.f32 %v1128, 0.0
        %v1200 = vmax.f32 %v1131, 0.0
        %v1201 = vmax.f32 %v1133, 0.0
        %v1202 = vmax.f32 %v1136, 0.0
        %v1203 = vmax.f32 %v1138, 0.0
        %v1204 = vpack.c.bf16 %v1141, %v1140
        %v1205 = vpack.c.bf16 %v1143, %v1142
        %v1206 = vpack.c.bf16 %v1145, %v1144
        %v1207 = vpack.c.bf16 %v1147, %v1146
        %v1208 = vpack.c.bf16 %v1149, %v1148
        %v1209 = vpack.c.bf16 %v1151, %v1150
        %v1210 = vpack.c.bf16 %v1153, %v1152
        %v1211 = vpack.c.bf16 %v1155, %v1154
        %v1212 = vpack.c.bf16 %v1157, %v1156
        %v1213 = vpack.c.bf16 %v1159, %v1158
        %v1214 = vpack.c.bf16 %v1161, %v1160
        %v1215 = vpack.c.bf16 %v1163, %v1162
        %v1216 = vpack.c.bf16 %v1165, %v1164
        %v1217 = vpack.c.bf16 %v1167, %v1166
        %v1218 = vpack.c.bf16 %v1169, %v1168
        %v1219 = vpack.c.bf16 %v1171, %v1170
        %v1220 = vpack.c.bf16 %v1173, %v1172
        %v1221 = vpack.c.bf16 %v1175, %v1174
        %v1222 = vpack.c.bf16 %v1177, %v1176
        %v1223 = vpack.c.bf16 %v1179, %v1178
        %v1224 = vpack.c.bf16 %v1181, %v1180
        %v1225 = vpack.c.bf16 %v1183, %v1182
        %v1226 = vpack.c.bf16 %v1185, %v1184
        %v1227 = vpack.c.bf16 %v1187, %v1186
        %v1228 = vpack.c.bf16 %v1189, %v1188
        %v1229 = vpack.c.bf16 %v1191, %v1190
        %v1230 = vpack.c.bf16 %v1193, %v1192
        %v1231 = vpack.c.bf16 %v1195, %v1194
        %v1232 = vpack.c.bf16 %v1197, %v1196
        %v1233 = vpack.c.bf16 %v1199, %v1198
        %v1234 = vpack.c.bf16 %v1201, %v1200
        %v1235 = vpack.c.bf16 %v1203, %v1202
        %v1236 = vld [vmem:[%s5] sm:$0xf]
        %v1237 = vld [vmem:[%s5 + $0x4] sm:$0xf]
        %v1238 = vld [vmem:[%s5 + $0x8] sm:$0xf]
        %v1239 = vld [vmem:[%s5 + $0xc] sm:$0xf]
        %v1240 = vld [vmem:[%s5 + $0x10] sm:$0xf]
        %v1241 = vld [vmem:[%s5 + $0x14] sm:$0xf]
        %v1242 = vld [vmem:[%s5 + $0x18] sm:$0xf]
        %v1243 = vld [vmem:[%s5 + $0x1c] sm:$0xf]
        %v1244 = vld [vmem:[%s5 + $0x20] sm:$0xf]
        %v1245 = vld [vmem:[%s5 + $0x24] sm:$0xf]
        %v1246 = vld [vmem:[%s5 + $0x28] sm:$0xf]
        %v1247 = vld [vmem:[%s5 + $0x2c] sm:$0xf]
        %v1248 = vld [vmem:[%s5 + $0x30] sm:$0xf]
        %v1249 = vld [vmem:[%s5 + $0x34] sm:$0xf]
        %v1250 = vld [vmem:[%s5 + $0x38] sm:$0xf]
        %v1251 = vld [vmem:[%s5 + $0x3c] sm:$0xf]
        %v1252 = vld [vmem:[%s6] sm:$0x1]
        %v1254 = vperm.slane %v1252, 0
        %v1272 = vunpack.c.l.b16 %v1236
        %v1273 = vunpack.c.l.b16 %v1237
        %v1274 = vunpack.c.l.b16 %v1238
        %v1275 = vunpack.c.l.b16 %v1239
        %v1276 = vunpack.c.l.b16 %v1240
        %v1277 = vunpack.c.l.b16 %v1241
        %v1278 = vunpack.c.l.b16 %v1242
        %v1279 = vunpack.c.l.b16 %v1243
        %v1280 = vunpack.c.l.b16 %v1244
        %v1281 = vunpack.c.l.b16 %v1245
        %v1282 = vunpack.c.l.b16 %v1246
        %v1283 = vunpack.c.l.b16 %v1247
        %v1284 = vunpack.c.l.b16 %v1248
        %v1285 = vunpack.c.l.b16 %v1249
        %v1286 = vunpack.c.l.b16 %v1250
        %v1287 = vunpack.c.l.b16 %v1251
        %v1288 = vpack.c.b16 %v1273, %v1272
        %v1289 = vpack.c.b16 %v1275, %v1274
        %v1290 = vpack.c.b16 %v1277, %v1276
        %v1291 = vpack.c.b16 %v1279, %v1278
        %v1292 = vpack.c.b16 %v1281, %v1280
        %v1293 = vpack.c.b16 %v1283, %v1282
        %v1294 = vpack.c.b16 %v1285, %v1284
        %v1295 = vpack.c.b16 %v1287, %v1286
        %1304 = vmatpush.bf16.msra.mxu0 %v1295
        %1305 = vmatpush.bf16.msra.mxu0 %v1294
        %1306 = vmatpush.bf16.msra.mxu0 %v1293
        %1307 = vmatpush.bf16.msra.mxu0 %v1292
        %1308 = vmatpush.bf16.msra.mxu0 %v1291
        %1309 = vmatpush.bf16.msra.mxu0 %v1290
        %1310 = vmatpush.bf16.msra.mxu0 %v1289
        %1311 = vmatpush.bf16.msra.mxu0 %v1288
        %1312 = vmatmul.bf16.gmra.mxu0 %v1204
        %v1313 = vpop.f32.mrf.mxu0
        %v1314 = vadd.f32 %v1254, %v1313
        %v1315 = vpop.f32.mrf.mxu0
        %v1316 = vadd.f32 %v1254, %v1315
        %1317 = vmatmul.bf16.gmra.mxu0 %v1205
        %v1318 = vpop.f32.mrf.mxu0
        %v1319 = vadd.f32 %v1254, %v1318
        %v1320 = vpop.f32.mrf.mxu0
        %v1321 = vadd.f32 %v1254, %v1320
        %1322 = vmatmul.bf16.gmra.mxu0 %v1206
        %v1323 = vpop.f32.mrf.mxu0
        %v1324 = vadd.f32 %v1254, %v1323
        %v1325 = vpop.f32.mrf.mxu0
        %v1326 = vadd.f32 %v1254, %v1325
        %1327 = vmatmul.bf16.gmra.mxu0 %v1207
        %v1328 = vpop.f32.mrf.mxu0
        %v1329 = vadd.f32 %v1254, %v1328
        %v1330 = vpop.f32.mrf.mxu0
        %v1331 = vadd.f32 %v1254, %v1330
        %1332 = vmatmul.bf16.gmra.mxu0 %v1208
        %v1333 = vpop.f32.mrf.mxu0
        %v1334 = vadd.f32 %v1254, %v1333
        %v1335 = vpop.f32.mrf.mxu0
        %v1336 = vadd.f32 %v1254, %v1335
        %1337 = vmatmul.bf16.gmra.mxu0 %v1209
        %v1338 = vpop.f32.mrf.mxu0
        %v1339 = vadd.f32 %v1254, %v1338
        %v1340 = vpop.f32.mrf.mxu0
        %v1341 = vadd.f32 %v1254, %v1340
        %1342 = vmatmul.bf16.gmra.mxu0 %v1210
        %v1343 = vpop.f32.mrf.mxu0
        %v1344 = vadd.f32 %v1254, %v1343
        %v1345 = vpop.f32.mrf.mxu0
        %v1346 = vadd.f32 %v1254, %v1345
        %1347 = vmatmul.bf16.gmra.mxu0 %v1211
        %v1348 = vpop.f32.mrf.mxu0
        %v1349 = vadd.f32 %v1254, %v1348
        %v1350 = vpop.f32.mrf.mxu0
        %v1351 = vadd.f32 %v1254, %v1350
        %1352 = vmatmul.bf16.gmra.mxu0 %v1212
        %v1353 = vpop.f32.mrf.mxu0
        %v1354 = vadd.f32 %v1254, %v1353
        %v1355 = vpop.f32.mrf.mxu0
        %v1356 = vadd.f32 %v1254, %v1355
        %1357 = vmatmul.bf16.gmra.mxu0 %v1213
        %v1358 = vpop.f32.mrf.mxu0
        %v1359 = vadd.f32 %v1254, %v1358
        %v1360 = vpop.f32.mrf.mxu0
        %v1361 = vadd.f32 %v1254, %v1360
        %1362 = vmatmul.bf16.gmra.mxu0 %v1214
        %v1363 = vpop.f32.mrf.mxu0
        %v1364 = vadd.f32 %v1254, %v1363
        %v1365 = vpop.f32.mrf.mxu0
        %v1366 = vadd.f32 %v1254, %v1365
        %1367 = vmatmul.bf16.gmra.mxu0 %v1215
        %v1368 = vpop.f32.mrf.mxu0
        %v1369 = vadd.f32 %v1254, %v1368
        %v1370 = vpop.f32.mrf.mxu0
        %v1371 = vadd.f32 %v1254, %v1370
        %1372 = vmatmul.bf16.gmra.mxu0 %v1216
        %v1373 = vpop.f32.mrf.mxu0
        %v1374 = vadd.f32 %v1254, %v1373
        %v1375 = vpop.f32.mrf.mxu0
        %v1376 = vadd.f32 %v1254, %v1375
        %1377 = vmatmul.bf16.gmra.mxu0 %v1217
        %v1378 = vpop.f32.mrf.mxu0
        %v1379 = vadd.f32 %v1254, %v1378
        %v1380 = vpop.f32.mrf.mxu0
        %v1381 = vadd.f32 %v1254, %v1380
        %1382 = vmatmul.bf16.gmra.mxu0 %v1218
        %v1383 = vpop.f32.mrf.mxu0
        %v1384 = vadd.f32 %v1254, %v1383
        %v1385 = vpop.f32.mrf.mxu0
        %v1386 = vadd.f32 %v1254, %v1385
        %1387 = vmatmul.bf16.gmra.mxu0 %v1219
        %v1388 = vpop.f32.mrf.mxu0
        %v1389 = vadd.f32 %v1254, %v1388
        %v1390 = vpop.f32.mrf.mxu0
        %v1391 = vadd.f32 %v1254, %v1390
        %1392 = vmatmul.bf16.gmra.mxu0 %v1220
        %v1393 = vpop.f32.mrf.mxu0
        %v1394 = vadd.f32 %v1254, %v1393
        %v1395 = vpop.f32.mrf.mxu0
        %v1396 = vadd.f32 %v1254, %v1395
        %1397 = vmatmul.bf16.gmra.mxu0 %v1221
        %v1398 = vpop.f32.mrf.mxu0
        %v1399 = vadd.f32 %v1254, %v1398
        %v1400 = vpop.f32.mrf.mxu0
        %v1401 = vadd.f32 %v1254, %v1400
        %1402 = vmatmul.bf16.gmra.mxu0 %v1222
        %v1403 = vpop.f32.mrf.mxu0
        %v1404 = vadd.f32 %v1254, %v1403
        %v1405 = vpop.f32.mrf.mxu0
        %v1406 = vadd.f32 %v1254, %v1405
        %1407 = vmatmul.bf16.gmra.mxu0 %v1223
        %v1408 = vpop.f32.mrf.mxu0
        %v1409 = vadd.f32 %v1254, %v1408
        %v1410 = vpop.f32.mrf.mxu0
        %v1411 = vadd.f32 %v1254, %v1410
        %1412 = vmatmul.bf16.gmra.mxu0 %v1224
        %v1413 = vpop.f32.mrf.mxu0
        %v1414 = vadd.f32 %v1254, %v1413
        %v1415 = vpop.f32.mrf.mxu0
        %v1416 = vadd.f32 %v1254, %v1415
        %1417 = vmatmul.bf16.gmra.mxu0 %v1225
        %v1418 = vpop.f32.mrf.mxu0
        %v1419 = vadd.f32 %v1254, %v1418
        %v1420 = vpop.f32.mrf.mxu0
        %v1421 = vadd.f32 %v1254, %v1420
        %1422 = vmatmul.bf16.gmra.mxu0 %v1226
        %v1423 = vpop.f32.mrf.mxu0
        %v1424 = vadd.f32 %v1254, %v1423
        %v1425 = vpop.f32.mrf.mxu0
        %v1426 = vadd.f32 %v1254, %v1425
        %1427 = vmatmul.bf16.gmra.mxu0 %v1227
        %v1428 = vpop.f32.mrf.mxu0
        %v1429 = vadd.f32 %v1254, %v1428
        %v1430 = vpop.f32.mrf.mxu0
        %v1431 = vadd.f32 %v1254, %v1430
        %1432 = vmatmul.bf16.gmra.mxu0 %v1228
        %v1433 = vpop.f32.mrf.mxu0
        %v1434 = vadd.f32 %v1254, %v1433
        %v1435 = vpop.f32.mrf.mxu0
        %v1436 = vadd.f32 %v1254, %v1435
        %1437 = vmatmul.bf16.gmra.mxu0 %v1229
        %v1438 = vpop.f32.mrf.mxu0
        %v1439 = vadd.f32 %v1254, %v1438
        %v1440 = vpop.f32.mrf.mxu0
        %v1441 = vadd.f32 %v1254, %v1440
        %1442 = vmatmul.bf16.gmra.mxu0 %v1230
        %v1443 = vpop.f32.mrf.mxu0
        %v1444 = vadd.f32 %v1254, %v1443
        %v1445 = vpop.f32.mrf.mxu0
        %v1446 = vadd.f32 %v1254, %v1445
        %1447 = vmatmul.bf16.gmra.mxu0 %v1231
        %v1448 = vpop.f32.mrf.mxu0
        %v1449 = vadd.f32 %v1254, %v1448
        %v1450 = vpop.f32.mrf.mxu0
        %v1451 = vadd.f32 %v1254, %v1450
        %1452 = vmatmul.bf16.gmra.mxu0 %v1232
        %v1453 = vpop.f32.mrf.mxu0
        %v1454 = vadd.f32 %v1254, %v1453
        %v1455 = vpop.f32.mrf.mxu0
        %v1456 = vadd.f32 %v1254, %v1455
        %1457 = vmatmul.bf16.gmra.mxu0 %v1233
        %v1458 = vpop.f32.mrf.mxu0
        %v1459 = vadd.f32 %v1254, %v1458
        %v1460 = vpop.f32.mrf.mxu0
        %v1461 = vadd.f32 %v1254, %v1460
        %1462 = vmatmul.bf16.gmra.mxu0 %v1234
        %v1463 = vpop.f32.mrf.mxu0
        %v1464 = vadd.f32 %v1254, %v1463
        %v1465 = vpop.f32.mrf.mxu0
        %v1466 = vadd.f32 %v1254, %v1465
        %1467 = vmatmul.bf16.gmra.mxu0 %v1235
        %v1468 = vpop.f32.mrf.mxu0
        %v1469 = vadd.f32 %v1254, %v1468
        %v1470 = vpop.f32.mrf.mxu0
        %v1471 = vadd.f32 %v1254, %v1470
        %1472 = vdwg.mxu0
        %v1473 = vxor.u32 %v1314, 2147483648
        %v1474 = vxor.u32 %v1316, 2147483648
        %v1475 = vxor.u32 %v1319, 2147483648
        %v1476 = vxor.u32 %v1321, 2147483648
        %v1477 = vxor.u32 %v1324, 2147483648
        %v1478 = vxor.u32 %v1326, 2147483648
        %v1479 = vxor.u32 %v1329, 2147483648
        %v1480 = vxor.u32 %v1331, 2147483648
        %v1481 = vxor.u32 %v1334, 2147483648
        %v1482 = vxor.u32 %v1336, 2147483648
        %v1483 = vxor.u32 %v1339, 2147483648
        %v1484 = vxor.u32 %v1341, 2147483648
        %v1485 = vxor.u32 %v1344, 2147483648
        %v1486 = vxor.u32 %v1346, 2147483648
        %v1487 = vxor.u32 %v1349, 2147483648
        %v1488 = vxor.u32 %v1351, 2147483648
        %v1489 = vxor.u32 %v1354, 2147483648
        %v1490 = vxor.u32 %v1356, 2147483648
        %v1491 = vxor.u32 %v1359, 2147483648
        %v1492 = vxor.u32 %v1361, 2147483648
        %v1493 = vxor.u32 %v1364, 2147483648
        %v1494 = vxor.u32 %v1366, 2147483648
        %v1495 = vxor.u32 %v1369, 2147483648
        %v1496 = vxor.u32 %v1371, 2147483648
        %v1497 = vxor.u32 %v1374, 2147483648
        %v1498 = vxor.u32 %v1376, 2147483648
        %v1499 = vxor.u32 %v1379, 2147483648
        %v1500 = vxor.u32 %v1381, 2147483648
        %v1501 = vxor.u32 %v1384, 2147483648
        %v1502 = vxor.u32 %v1386, 2147483648
        %v1503 = vxor.u32 %v1389, 2147483648
        %v1504 = vxor.u32 %v1391, 2147483648
        %v1505 = vxor.u32 %v1394, 2147483648
        %v1506 = vxor.u32 %v1396, 2147483648
        %v1507 = vxor.u32 %v1399, 2147483648
        %v1508 = vxor.u32 %v1401, 2147483648
        %v1509 = vxor.u32 %v1404, 2147483648
        %v1510 = vxor.u32 %v1406, 2147483648
        %v1511 = vxor.u32 %v1409, 2147483648
        %v1512 = vxor.u32 %v1411, 2147483648
        %v1513 = vxor.u32 %v1414, 2147483648
        %v1514 = vxor.u32 %v1416, 2147483648
        %v1515 = vxor.u32 %v1419, 2147483648
        %v1516 = vxor.u32 %v1421, 2147483648
        %v1517 = vxor.u32 %v1424, 2147483648
        %v1518 = vxor.u32 %v1426, 2147483648
        %v1519 = vxor.u32 %v1429, 2147483648
        %v1520 = vxor.u32 %v1431, 2147483648
        %v1521 = vxor.u32 %v1434, 2147483648
        %v1522 = vxor.u32 %v1436, 2147483648
        %v1523 = vxor.u32 %v1439, 2147483648
        %v1524 = vxor.u32 %v1441, 2147483648
        %v1525 = vxor.u32 %v1444, 2147483648
        %v1526 = vxor.u32 %v1446, 2147483648
        %v1527 = vxor.u32 %v1449, 2147483648
        %v1528 = vxor.u32 %v1451, 2147483648
        %v1529 = vxor.u32 %v1454, 2147483648
        %v1530 = vxor.u32 %v1456, 2147483648
        %v1531 = vxor.u32 %v1459, 2147483648
        %v1532 = vxor.u32 %v1461, 2147483648
        %v1533 = vxor.u32 %v1464, 2147483648
        %v1534 = vxor.u32 %v1466, 2147483648
        %v1535 = vxor.u32 %v1469, 2147483648
        %v1536 = vxor.u32 %v1471, 2147483648
        %v1537 = vmul.f32 %v1473, 1.442695
        %v1538 = vpow.pop %v1537
        %v1539 = vmul.f32 %v1474, 1.442695
        %v1540 = vpow.pop %v1539
        %v1541 = vmul.f32 %v1475, 1.442695
        %v1542 = vpow.pop %v1541
        %v1543 = vmul.f32 %v1476, 1.442695
        %v1544 = vpow.pop %v1543
        %v1545 = vmul.f32 %v1477, 1.442695
        %v1546 = vpow.pop %v1545
        %v1547 = vmul.f32 %v1478, 1.442695
        %v1548 = vpow.pop %v1547
        %v1549 = vmul.f32 %v1479, 1.442695
        %v1550 = vpow.pop %v1549
        %v1551 = vmul.f32 %v1480, 1.442695
        %v1552 = vpow.pop %v1551
        %v1553 = vmul.f32 %v1481, 1.442695
        %v1554 = vpow.pop %v1553
        %v1555 = vmul.f32 %v1482, 1.442695
        %v1556 = vpow.pop %v1555
        %v1557 = vmul.f32 %v1483, 1.442695
        %v1558 = vpow.pop %v1557
        %v1559 = vmul.f32 %v1484, 1.442695
        %v1560 = vpow.pop %v1559
        %v1561 = vmul.f32 %v1485, 1.442695
        %v1562 = vpow.pop %v1561
        %v1563 = vmul.f32 %v1486, 1.442695
        %v1564 = vpow.pop %v1563
        %v1565 = vmul.f32 %v1487, 1.442695
        %v1566 = vpow.pop %v1565
        %v1567 = vmul.f32 %v1488, 1.442695
        %v1568 = vpow.pop %v1567
        %v1569 = vmul.f32 %v1489, 1.442695
        %v1570 = vpow.pop %v1569
        %v1571 = vmul.f32 %v1490, 1.442695
        %v1572 = vpow.pop %v1571
        %v1573 = vmul.f32 %v1491, 1.442695
        %v1574 = vpow.pop %v1573
        %v1575 = vmul.f32 %v1492, 1.442695
        %v1576 = vpow.pop %v1575
        %v1577 = vmul.f32 %v1493, 1.442695
        %v1578 = vpow.pop %v1577
        %v1579 = vmul.f32 %v1494, 1.442695
        %v1580 = vpow.pop %v1579
        %v1581 = vmul.f32 %v1495, 1.442695
        %v1582 = vpow.pop %v1581
        %v1583 = vmul.f32 %v1496, 1.442695
        %v1584 = vpow.pop %v1583
        %v1585 = vmul.f32 %v1497, 1.442695
        %v1586 = vpow.pop %v1585
        %v1587 = vmul.f32 %v1498, 1.442695
        %v1588 = vpow.pop %v1587
        %v1589 = vmul.f32 %v1499, 1.442695
        %v1590 = vpow.pop %v1589
        %v1591 = vmul.f32 %v1500, 1.442695
        %v1592 = vpow.pop %v1591
        %v1593 = vmul.f32 %v1501, 1.442695
        %v1594 = vpow.pop %v1593
        %v1595 = vmul.f32 %v1502, 1.442695
        %v1596 = vpow.pop %v1595
        %v1597 = vmul.f32 %v1503, 1.442695
        %v1598 = vpow.pop %v1597
        %v1599 = vmul.f32 %v1504, 1.442695
        %v1600 = vpow.pop %v1599
        %v1601 = vmul.f32 %v1505, 1.442695
        %v1602 = vpow.pop %v1601
        %v1603 = vmul.f32 %v1506, 1.442695
        %v1604 = vpow.pop %v1603
        %v1605 = vmul.f32 %v1507, 1.442695
        %v1606 = vpow.pop %v1605
        %v1607 = vmul.f32 %v1508, 1.442695
        %v1608 = vpow.pop %v1607
        %v1609 = vmul.f32 %v1509, 1.442695
        %v1610 = vpow.pop %v1609
        %v1611 = vmul.f32 %v1510, 1.442695
        %v1612 = vpow.pop %v1611
        %v1613 = vmul.f32 %v1511, 1.442695
        %v1614 = vpow.pop %v1613
        %v1615 = vmul.f32 %v1512, 1.442695
        %v1616 = vpow.pop %v1615
        %v1617 = vmul.f32 %v1513, 1.442695
        %v1618 = vpow.pop %v1617
        %v1619 = vmul.f32 %v1514, 1.442695
        %v1620 = vpow.pop %v1619
        %v1621 = vmul.f32 %v1515, 1.442695
        %v1622 = vpow.pop %v1621
        %v1623 = vmul.f32 %v1516, 1.442695
        %v1624 = vpow.pop %v1623
        %v1625 = vmul.f32 %v1517, 1.442695
        %v1626 = vpow.pop %v1625
        %v1627 = vmul.f32 %v1518, 1.442695
        %v1628 = vpow.pop %v1627
        %v1629 = vmul.f32 %v1519, 1.442695
        %v1630 = vpow.pop %v1629
        %v1631 = vmul.f32 %v1520, 1.442695
        %v1632 = vpow.pop %v1631
        %v1633 = vmul.f32 %v1521, 1.442695
        %v1634 = vpow.pop %v1633
        %v1635 = vmul.f32 %v1522, 1.442695
        %v1636 = vpow.pop %v1635
        %v1637 = vmul.f32 %v1523, 1.442695
        %v1638 = vpow.pop %v1637
        %v1639 = vmul.f32 %v1524, 1.442695
        %v1640 = vpow.pop %v1639
        %v1641 = vmul.f32 %v1525, 1.442695
        %v1642 = vpow.pop %v1641
        %v1643 = vmul.f32 %v1526, 1.442695
        %v1644 = vpow.pop %v1643
        %v1645 = vmul.f32 %v1527, 1.442695
        %v1646 = vpow.pop %v1645
        %v1647 = vmul.f32 %v1528, 1.442695
        %v1648 = vpow.pop %v1647
        %v1649 = vmul.f32 %v1529, 1.442695
        %v1650 = vpow.pop %v1649
        %v1651 = vmul.f32 %v1530, 1.442695
        %v1652 = vpow.pop %v1651
        %v1653 = vmul.f32 %v1531, 1.442695
        %v1654 = vpow.pop %v1653
        %v1655 = vmul.f32 %v1532, 1.442695
        %v1656 = vpow.pop %v1655
        %v1657 = vmul.f32 %v1533, 1.442695
        %v1658 = vpow.pop %v1657
        %v1659 = vmul.f32 %v1534, 1.442695
        %v1660 = vpow.pop %v1659
        %v1661 = vmul.f32 %v1535, 1.442695
        %v1662 = vpow.pop %v1661
        %v1663 = vmul.f32 %v1536, 1.442695
        %v1664 = vpow.pop %v1663
        %v1665 = vadd.f32 %v1538, 1.0
        %v1666 = vadd.f32 %v1540, 1.0
        %v1667 = vadd.f32 %v1542, 1.0
        %v1668 = vadd.f32 %v1544, 1.0
        %v1669 = vadd.f32 %v1546, 1.0
        %v1670 = vadd.f32 %v1548, 1.0
        %v1671 = vadd.f32 %v1550, 1.0
        %v1672 = vadd.f32 %v1552, 1.0
        %v1673 = vadd.f32 %v1554, 1.0
        %v1674 = vadd.f32 %v1556, 1.0
        %v1675 = vadd.f32 %v1558, 1.0
        %v1676 = vadd.f32 %v1560, 1.0
        %v1677 = vadd.f32 %v1562, 1.0
        %v1678 = vadd.f32 %v1564, 1.0
        %v1679 = vadd.f32 %v1566, 1.0
        %v1680 = vadd.f32 %v1568, 1.0
        %v1681 = vadd.f32 %v1570, 1.0
        %v1682 = vadd.f32 %v1572, 1.0
        %v1683 = vadd.f32 %v1574, 1.0
        %v1684 = vadd.f32 %v1576, 1.0
        %v1685 = vadd.f32 %v1578, 1.0
        %v1686 = vadd.f32 %v1580, 1.0
        %v1687 = vadd.f32 %v1582, 1.0
        %v1688 = vadd.f32 %v1584, 1.0
        %v1689 = vadd.f32 %v1586, 1.0
        %v1690 = vadd.f32 %v1588, 1.0
        %v1691 = vadd.f32 %v1590, 1.0
        %v1692 = vadd.f32 %v1592, 1.0
        %v1693 = vadd.f32 %v1594, 1.0
        %v1694 = vadd.f32 %v1596, 1.0
        %v1695 = vadd.f32 %v1598, 1.0
        %v1696 = vadd.f32 %v1600, 1.0
        %v1697 = vadd.f32 %v1602, 1.0
        %v1698 = vadd.f32 %v1604, 1.0
        %v1699 = vadd.f32 %v1606, 1.0
        %v1700 = vadd.f32 %v1608, 1.0
        %v1701 = vadd.f32 %v1610, 1.0
        %v1702 = vadd.f32 %v1612, 1.0
        %v1703 = vadd.f32 %v1614, 1.0
        %v1704 = vadd.f32 %v1616, 1.0
        %v1705 = vadd.f32 %v1618, 1.0
        %v1706 = vadd.f32 %v1620, 1.0
        %v1707 = vadd.f32 %v1622, 1.0
        %v1708 = vadd.f32 %v1624, 1.0
        %v1709 = vadd.f32 %v1626, 1.0
        %v1710 = vadd.f32 %v1628, 1.0
        %v1711 = vadd.f32 %v1630, 1.0
        %v1712 = vadd.f32 %v1632, 1.0
        %v1713 = vadd.f32 %v1634, 1.0
        %v1714 = vadd.f32 %v1636, 1.0
        %v1715 = vadd.f32 %v1638, 1.0
        %v1716 = vadd.f32 %v1640, 1.0
        %v1717 = vadd.f32 %v1642, 1.0
        %v1718 = vadd.f32 %v1644, 1.0
        %v1719 = vadd.f32 %v1646, 1.0
        %v1720 = vadd.f32 %v1648, 1.0
        %v1721 = vadd.f32 %v1650, 1.0
        %v1722 = vadd.f32 %v1652, 1.0
        %v1723 = vadd.f32 %v1654, 1.0
        %v1724 = vadd.f32 %v1656, 1.0
        %v1725 = vadd.f32 %v1658, 1.0
        %v1726 = vadd.f32 %v1660, 1.0
        %v1727 = vadd.f32 %v1662, 1.0
        %v1728 = vadd.f32 %v1664, 1.0
        %v1729 = vrcp.pop %v1665
        %v1730 = vmul.f32 %v1665, %v1729
        %v1731 = vsub.f32 1.0, %v1730
        %v1732 = vmul.f32 %v1729, %v1731
        %v1733 = vadd.f32 %v1729, %v1732
        %vm1734 = vweird.f32 %v1665
        %vm1735 = vweird.f32 %v1729
        %vm1736 = vmor %vm1734, %vm1735
        %v1737 = vsel %vm1736, %v1729, %v1733
        %v1738 = vand.u32 2147483647, %v1665
        %vm1739 = vcmp.eq.f32.partialorder %v1738, 8.507059e+37
        %v1740 = vand.u32 %v1665, 2147483648
        %v1741 = vor.u32 1.1754944e-38, %v1740
        %v1742 = vsel %vm1739, %v1741, %v1737
        %v1743 = vmul.f32 1.0, %v1742
        %v1744 = vrcp.pop %v1666
        %v1745 = vmul.f32 %v1666, %v1744
        %v1746 = vsub.f32 1.0, %v1745
        %v1747 = vmul.f32 %v1744, %v1746
        %v1748 = vadd.f32 %v1744, %v1747
        %vm1749 = vweird.f32 %v1666
        %vm1750 = vweird.f32 %v1744
        %vm1751 = vmor %vm1749, %vm1750
        %v1752 = vsel %vm1751, %v1744, %v1748
        %v1753 = vand.u32 2147483647, %v1666
        %vm1754 = vcmp.eq.f32.partialorder %v1753, 8.507059e+37
        %v1755 = vand.u32 %v1666, 2147483648
        %v1756 = vor.u32 1.1754944e-38, %v1755
        %v1757 = vsel %vm1754, %v1756, %v1752
        %v1758 = vmul.f32 1.0, %v1757
        %v1759 = vrcp.pop %v1667
        %v1760 = vmul.f32 %v1667, %v1759
        %v1761 = vsub.f32 1.0, %v1760
        %v1762 = vmul.f32 %v1759, %v1761
        %v1763 = vadd.f32 %v1759, %v1762
        %vm1764 = vweird.f32 %v1667
        %vm1765 = vweird.f32 %v1759
        %vm1766 = vmor %vm1764, %vm1765
        %v1767 = vsel %vm1766, %v1759, %v1763
        %v1768 = vand.u32 2147483647, %v1667
        %vm1769 = vcmp.eq.f32.partialorder %v1768, 8.507059e+37
        %v1770 = vand.u32 %v1667, 2147483648
        %v1771 = vor.u32 1.1754944e-38, %v1770
        %v1772 = vsel %vm1769, %v1771, %v1767
        %v1773 = vmul.f32 1.0, %v1772
        %v1774 = vrcp.pop %v1668
        %v1775 = vmul.f32 %v1668, %v1774
        %v1776 = vsub.f32 1.0, %v1775
        %v1777 = vmul.f32 %v1774, %v1776
        %v1778 = vadd.f32 %v1774, %v1777
        %vm1779 = vweird.f32 %v1668
        %vm1780 = vweird.f32 %v1774
        %vm1781 = vmor %vm1779, %vm1780
        %v1782 = vsel %vm1781, %v1774, %v1778
        %v1783 = vand.u32 2147483647, %v1668
        %vm1784 = vcmp.eq.f32.partialorder %v1783, 8.507059e+37
        %v1785 = vand.u32 %v1668, 2147483648
        %v1786 = vor.u32 1.1754944e-38, %v1785
        %v1787 = vsel %vm1784, %v1786, %v1782
        %v1788 = vmul.f32 1.0, %v1787
        %v1789 = vrcp.pop %v1669
        %v1790 = vmul.f32 %v1669, %v1789
        %v1791 = vsub.f32 1.0, %v1790
        %v1792 = vmul.f32 %v1789, %v1791
        %v1793 = vadd.f32 %v1789, %v1792
        %vm1794 = vweird.f32 %v1669
        %vm1795 = vweird.f32 %v1789
        %vm1796 = vmor %vm1794, %vm1795
        %v1797 = vsel %vm1796, %v1789, %v1793
        %v1798 = vand.u32 2147483647, %v1669
        %vm1799 = vcmp.eq.f32.partialorder %v1798, 8.507059e+37
        %v1800 = vand.u32 %v1669, 2147483648
        %v1801 = vor.u32 1.1754944e-38, %v1800
        %v1802 = vsel %vm1799, %v1801, %v1797
        %v1803 = vmul.f32 1.0, %v1802
        %v1804 = vrcp.pop %v1670
        %v1805 = vmul.f32 %v1670, %v1804
        %v1806 = vsub.f32 1.0, %v1805
        %v1807 = vmul.f32 %v1804, %v1806
        %v1808 = vadd.f32 %v1804, %v1807
        %vm1809 = vweird.f32 %v1670
        %vm1810 = vweird.f32 %v1804
        %vm1811 = vmor %vm1809, %vm1810
        %v1812 = vsel %vm1811, %v1804, %v1808
        %v1813 = vand.u32 2147483647, %v1670
        %vm1814 = vcmp.eq.f32.partialorder %v1813, 8.507059e+37
        %v1815 = vand.u32 %v1670, 2147483648
        %v1816 = vor.u32 1.1754944e-38, %v1815
        %v1817 = vsel %vm1814, %v1816, %v1812
        %v1818 = vmul.f32 1.0, %v1817
        %v1819 = vrcp.pop %v1671
        %v1820 = vmul.f32 %v1671, %v1819
        %v1821 = vsub.f32 1.0, %v1820
        %v1822 = vmul.f32 %v1819, %v1821
        %v1823 = vadd.f32 %v1819, %v1822
        %vm1824 = vweird.f32 %v1671
        %vm1825 = vweird.f32 %v1819
        %vm1826 = vmor %vm1824, %vm1825
        %v1827 = vsel %vm1826, %v1819, %v1823
        %v1828 = vand.u32 2147483647, %v1671
        %vm1829 = vcmp.eq.f32.partialorder %v1828, 8.507059e+37
        %v1830 = vand.u32 %v1671, 2147483648
        %v1831 = vor.u32 1.1754944e-38, %v1830
        %v1832 = vsel %vm1829, %v1831, %v1827
        %v1833 = vmul.f32 1.0, %v1832
        %v1834 = vrcp.pop %v1672
        %v1835 = vmul.f32 %v1672, %v1834
        %v1836 = vsub.f32 1.0, %v1835
        %v1837 = vmul.f32 %v1834, %v1836
        %v1838 = vadd.f32 %v1834, %v1837
        %vm1839 = vweird.f32 %v1672
        %vm1840 = vweird.f32 %v1834
        %vm1841 = vmor %vm1839, %vm1840
        %v1842 = vsel %vm1841, %v1834, %v1838
        %v1843 = vand.u32 2147483647, %v1672
        %vm1844 = vcmp.eq.f32.partialorder %v1843, 8.507059e+37
        %v1845 = vand.u32 %v1672, 2147483648
        %v1846 = vor.u32 1.1754944e-38, %v1845
        %v1847 = vsel %vm1844, %v1846, %v1842
        %v1848 = vmul.f32 1.0, %v1847
        %v1849 = vrcp.pop %v1673
        %v1850 = vmul.f32 %v1673, %v1849
        %v1851 = vsub.f32 1.0, %v1850
        %v1852 = vmul.f32 %v1849, %v1851
        %v1853 = vadd.f32 %v1849, %v1852
        %vm1854 = vweird.f32 %v1673
        %vm1855 = vweird.f32 %v1849
        %vm1856 = vmor %vm1854, %vm1855
        %v1857 = vsel %vm1856, %v1849, %v1853
        %v1858 = vand.u32 2147483647, %v1673
        %vm1859 = vcmp.eq.f32.partialorder %v1858, 8.507059e+37
        %v1860 = vand.u32 %v1673, 2147483648
        %v1861 = vor.u32 1.1754944e-38, %v1860
        %v1862 = vsel %vm1859, %v1861, %v1857
        %v1863 = vmul.f32 1.0, %v1862
        %v1864 = vrcp.pop %v1674
        %v1865 = vmul.f32 %v1674, %v1864
        %v1866 = vsub.f32 1.0, %v1865
        %v1867 = vmul.f32 %v1864, %v1866
        %v1868 = vadd.f32 %v1864, %v1867
        %vm1869 = vweird.f32 %v1674
        %vm1870 = vweird.f32 %v1864
        %vm1871 = vmor %vm1869, %vm1870
        %v1872 = vsel %vm1871, %v1864, %v1868
        %v1873 = vand.u32 2147483647, %v1674
        %vm1874 = vcmp.eq.f32.partialorder %v1873, 8.507059e+37
        %v1875 = vand.u32 %v1674, 2147483648
        %v1876 = vor.u32 1.1754944e-38, %v1875
        %v1877 = vsel %vm1874, %v1876, %v1872
        %v1878 = vmul.f32 1.0, %v1877
        %v1879 = vrcp.pop %v1675
        %v1880 = vmul.f32 %v1675, %v1879
        %v1881 = vsub.f32 1.0, %v1880
        %v1882 = vmul.f32 %v1879, %v1881
        %v1883 = vadd.f32 %v1879, %v1882
        %vm1884 = vweird.f32 %v1675
        %vm1885 = vweird.f32 %v1879
        %vm1886 = vmor %vm1884, %vm1885
        %v1887 = vsel %vm1886, %v1879, %v1883
        %v1888 = vand.u32 2147483647, %v1675
        %vm1889 = vcmp.eq.f32.partialorder %v1888, 8.507059e+37
        %v1890 = vand.u32 %v1675, 2147483648
        %v1891 = vor.u32 1.1754944e-38, %v1890
        %v1892 = vsel %vm1889, %v1891, %v1887
        %v1893 = vmul.f32 1.0, %v1892
        %v1894 = vrcp.pop %v1676
        %v1895 = vmul.f32 %v1676, %v1894
        %v1896 = vsub.f32 1.0, %v1895
        %v1897 = vmul.f32 %v1894, %v1896
        %v1898 = vadd.f32 %v1894, %v1897
        %vm1899 = vweird.f32 %v1676
        %vm1900 = vweird.f32 %v1894
        %vm1901 = vmor %vm1899, %vm1900
        %v1902 = vsel %vm1901, %v1894, %v1898
        %v1903 = vand.u32 2147483647, %v1676
        %vm1904 = vcmp.eq.f32.partialorder %v1903, 8.507059e+37
        %v1905 = vand.u32 %v1676, 2147483648
        %v1906 = vor.u32 1.1754944e-38, %v1905
        %v1907 = vsel %vm1904, %v1906, %v1902
        %v1908 = vmul.f32 1.0, %v1907
        %v1909 = vrcp.pop %v1677
        %v1910 = vmul.f32 %v1677, %v1909
        %v1911 = vsub.f32 1.0, %v1910
        %v1912 = vmul.f32 %v1909, %v1911
        %v1913 = vadd.f32 %v1909, %v1912
        %vm1914 = vweird.f32 %v1677
        %vm1915 = vweird.f32 %v1909
        %vm1916 = vmor %vm1914, %vm1915
        %v1917 = vsel %vm1916, %v1909, %v1913
        %v1918 = vand.u32 2147483647, %v1677
        %vm1919 = vcmp.eq.f32.partialorder %v1918, 8.507059e+37
        %v1920 = vand.u32 %v1677, 2147483648
        %v1921 = vor.u32 1.1754944e-38, %v1920
        %v1922 = vsel %vm1919, %v1921, %v1917
        %v1923 = vmul.f32 1.0, %v1922
        %v1924 = vrcp.pop %v1678
        %v1925 = vmul.f32 %v1678, %v1924
        %v1926 = vsub.f32 1.0, %v1925
        %v1927 = vmul.f32 %v1924, %v1926
        %v1928 = vadd.f32 %v1924, %v1927
        %vm1929 = vweird.f32 %v1678
        %vm1930 = vweird.f32 %v1924
        %vm1931 = vmor %vm1929, %vm1930
        %v1932 = vsel %vm1931, %v1924, %v1928
        %v1933 = vand.u32 2147483647, %v1678
        %vm1934 = vcmp.eq.f32.partialorder %v1933, 8.507059e+37
        %v1935 = vand.u32 %v1678, 2147483648
        %v1936 = vor.u32 1.1754944e-38, %v1935
        %v1937 = vsel %vm1934, %v1936, %v1932
        %v1938 = vmul.f32 1.0, %v1937
        %v1939 = vrcp.pop %v1679
        %v1940 = vmul.f32 %v1679, %v1939
        %v1941 = vsub.f32 1.0, %v1940
        %v1942 = vmul.f32 %v1939, %v1941
        %v1943 = vadd.f32 %v1939, %v1942
        %vm1944 = vweird.f32 %v1679
        %vm1945 = vweird.f32 %v1939
        %vm1946 = vmor %vm1944, %vm1945
        %v1947 = vsel %vm1946, %v1939, %v1943
        %v1948 = vand.u32 2147483647, %v1679
        %vm1949 = vcmp.eq.f32.partialorder %v1948, 8.507059e+37
        %v1950 = vand.u32 %v1679, 2147483648
        %v1951 = vor.u32 1.1754944e-38, %v1950
        %v1952 = vsel %vm1949, %v1951, %v1947
        %v1953 = vmul.f32 1.0, %v1952
        %v1954 = vrcp.pop %v1680
        %v1955 = vmul.f32 %v1680, %v1954
        %v1956 = vsub.f32 1.0, %v1955
        %v1957 = vmul.f32 %v1954, %v1956
        %v1958 = vadd.f32 %v1954, %v1957
        %vm1959 = vweird.f32 %v1680
        %vm1960 = vweird.f32 %v1954
        %vm1961 = vmor %vm1959, %vm1960
        %v1962 = vsel %vm1961, %v1954, %v1958
        %v1963 = vand.u32 2147483647, %v1680
        %vm1964 = vcmp.eq.f32.partialorder %v1963, 8.507059e+37
        %v1965 = vand.u32 %v1680, 2147483648
        %v1966 = vor.u32 1.1754944e-38, %v1965
        %v1967 = vsel %vm1964, %v1966, %v1962
        %v1968 = vmul.f32 1.0, %v1967
        %v1969 = vrcp.pop %v1681
        %v1970 = vmul.f32 %v1681, %v1969
        %v1971 = vsub.f32 1.0, %v1970
        %v1972 = vmul.f32 %v1969, %v1971
        %v1973 = vadd.f32 %v1969, %v1972
        %vm1974 = vweird.f32 %v1681
        %vm1975 = vweird.f32 %v1969
        %vm1976 = vmor %vm1974, %vm1975
        %v1977 = vsel %vm1976, %v1969, %v1973
        %v1978 = vand.u32 2147483647, %v1681
        %vm1979 = vcmp.eq.f32.partialorder %v1978, 8.507059e+37
        %v1980 = vand.u32 %v1681, 2147483648
        %v1981 = vor.u32 1.1754944e-38, %v1980
        %v1982 = vsel %vm1979, %v1981, %v1977
        %v1983 = vmul.f32 1.0, %v1982
        %v1984 = vrcp.pop %v1682
        %v1985 = vmul.f32 %v1682, %v1984
        %v1986 = vsub.f32 1.0, %v1985
        %v1987 = vmul.f32 %v1984, %v1986
        %v1988 = vadd.f32 %v1984, %v1987
        %vm1989 = vweird.f32 %v1682
        %vm1990 = vweird.f32 %v1984
        %vm1991 = vmor %vm1989, %vm1990
        %v1992 = vsel %vm1991, %v1984, %v1988
        %v1993 = vand.u32 2147483647, %v1682
        %vm1994 = vcmp.eq.f32.partialorder %v1993, 8.507059e+37
        %v1995 = vand.u32 %v1682, 2147483648
        %v1996 = vor.u32 1.1754944e-38, %v1995
        %v1997 = vsel %vm1994, %v1996, %v1992
        %v1998 = vmul.f32 1.0, %v1997
        %v1999 = vrcp.pop %v1683
        %v2000 = vmul.f32 %v1683, %v1999
        %v2001 = vsub.f32 1.0, %v2000
        %v2002 = vmul.f32 %v1999, %v2001
        %v2003 = vadd.f32 %v1999, %v2002
        %vm2004 = vweird.f32 %v1683
        %vm2005 = vweird.f32 %v1999
        %vm2006 = vmor %vm2004, %vm2005
        %v2007 = vsel %vm2006, %v1999, %v2003
        %v2008 = vand.u32 2147483647, %v1683
        %vm2009 = vcmp.eq.f32.partialorder %v2008, 8.507059e+37
        %v2010 = vand.u32 %v1683, 2147483648
        %v2011 = vor.u32 1.1754944e-38, %v2010
        %v2012 = vsel %vm2009, %v2011, %v2007
        %v2013 = vmul.f32 1.0, %v2012
        %v2014 = vrcp.pop %v1684
        %v2015 = vmul.f32 %v1684, %v2014
        %v2016 = vsub.f32 1.0, %v2015
        %v2017 = vmul.f32 %v2014, %v2016
        %v2018 = vadd.f32 %v2014, %v2017
        %vm2019 = vweird.f32 %v1684
        %vm2020 = vweird.f32 %v2014
        %vm2021 = vmor %vm2019, %vm2020
        %v2022 = vsel %vm2021, %v2014, %v2018
        %v2023 = vand.u32 2147483647, %v1684
        %vm2024 = vcmp.eq.f32.partialorder %v2023, 8.507059e+37
        %v2025 = vand.u32 %v1684, 2147483648
        %v2026 = vor.u32 1.1754944e-38, %v2025
        %v2027 = vsel %vm2024, %v2026, %v2022
        %v2028 = vmul.f32 1.0, %v2027
        %v2029 = vrcp.pop %v1685
        %v2030 = vmul.f32 %v1685, %v2029
        %v2031 = vsub.f32 1.0, %v2030
        %v2032 = vmul.f32 %v2029, %v2031
        %v2033 = vadd.f32 %v2029, %v2032
        %vm2034 = vweird.f32 %v1685
        %vm2035 = vweird.f32 %v2029
        %vm2036 = vmor %vm2034, %vm2035
        %v2037 = vsel %vm2036, %v2029, %v2033
        %v2038 = vand.u32 2147483647, %v1685
        %vm2039 = vcmp.eq.f32.partialorder %v2038, 8.507059e+37
        %v2040 = vand.u32 %v1685, 2147483648
        %v2041 = vor.u32 1.1754944e-38, %v2040
        %v2042 = vsel %vm2039, %v2041, %v2037
        %v2043 = vmul.f32 1.0, %v2042
        %v2044 = vrcp.pop %v1686
        %v2045 = vmul.f32 %v1686, %v2044
        %v2046 = vsub.f32 1.0, %v2045
        %v2047 = vmul.f32 %v2044, %v2046
        %v2048 = vadd.f32 %v2044, %v2047
        %vm2049 = vweird.f32 %v1686
        %vm2050 = vweird.f32 %v2044
        %vm2051 = vmor %vm2049, %vm2050
        %v2052 = vsel %vm2051, %v2044, %v2048
        %v2053 = vand.u32 2147483647, %v1686
        %vm2054 = vcmp.eq.f32.partialorder %v2053, 8.507059e+37
        %v2055 = vand.u32 %v1686, 2147483648
        %v2056 = vor.u32 1.1754944e-38, %v2055
        %v2057 = vsel %vm2054, %v2056, %v2052
        %v2058 = vmul.f32 1.0, %v2057
        %v2059 = vrcp.pop %v1687
        %v2060 = vmul.f32 %v1687, %v2059
        %v2061 = vsub.f32 1.0, %v2060
        %v2062 = vmul.f32 %v2059, %v2061
        %v2063 = vadd.f32 %v2059, %v2062
        %vm2064 = vweird.f32 %v1687
        %vm2065 = vweird.f32 %v2059
        %vm2066 = vmor %vm2064, %vm2065
        %v2067 = vsel %vm2066, %v2059, %v2063
        %v2068 = vand.u32 2147483647, %v1687
        %vm2069 = vcmp.eq.f32.partialorder %v2068, 8.507059e+37
        %v2070 = vand.u32 %v1687, 2147483648
        %v2071 = vor.u32 1.1754944e-38, %v2070
        %v2072 = vsel %vm2069, %v2071, %v2067
        %v2073 = vmul.f32 1.0, %v2072
        %v2074 = vrcp.pop %v1688
        %v2075 = vmul.f32 %v1688, %v2074
        %v2076 = vsub.f32 1.0, %v2075
        %v2077 = vmul.f32 %v2074, %v2076
        %v2078 = vadd.f32 %v2074, %v2077
        %vm2079 = vweird.f32 %v1688
        %vm2080 = vweird.f32 %v2074
        %vm2081 = vmor %vm2079, %vm2080
        %v2082 = vsel %vm2081, %v2074, %v2078
        %v2083 = vand.u32 2147483647, %v1688
        %vm2084 = vcmp.eq.f32.partialorder %v2083, 8.507059e+37
        %v2085 = vand.u32 %v1688, 2147483648
        %v2086 = vor.u32 1.1754944e-38, %v2085
        %v2087 = vsel %vm2084, %v2086, %v2082
        %v2088 = vmul.f32 1.0, %v2087
        %v2089 = vrcp.pop %v1689
        %v2090 = vmul.f32 %v1689, %v2089
        %v2091 = vsub.f32 1.0, %v2090
        %v2092 = vmul.f32 %v2089, %v2091
        %v2093 = vadd.f32 %v2089, %v2092
        %vm2094 = vweird.f32 %v1689
        %vm2095 = vweird.f32 %v2089
        %vm2096 = vmor %vm2094, %vm2095
        %v2097 = vsel %vm2096, %v2089, %v2093
        %v2098 = vand.u32 2147483647, %v1689
        %vm2099 = vcmp.eq.f32.partialorder %v2098, 8.507059e+37
        %v2100 = vand.u32 %v1689, 2147483648
        %v2101 = vor.u32 1.1754944e-38, %v2100
        %v2102 = vsel %vm2099, %v2101, %v2097
        %v2103 = vmul.f32 1.0, %v2102
        %v2104 = vrcp.pop %v1690
        %v2105 = vmul.f32 %v1690, %v2104
        %v2106 = vsub.f32 1.0, %v2105
        %v2107 = vmul.f32 %v2104, %v2106
        %v2108 = vadd.f32 %v2104, %v2107
        %vm2109 = vweird.f32 %v1690
        %vm2110 = vweird.f32 %v2104
        %vm2111 = vmor %vm2109, %vm2110
        %v2112 = vsel %vm2111, %v2104, %v2108
        %v2113 = vand.u32 2147483647, %v1690
        %vm2114 = vcmp.eq.f32.partialorder %v2113, 8.507059e+37
        %v2115 = vand.u32 %v1690, 2147483648
        %v2116 = vor.u32 1.1754944e-38, %v2115
        %v2117 = vsel %vm2114, %v2116, %v2112
        %v2118 = vmul.f32 1.0, %v2117
        %v2119 = vrcp.pop %v1691
        %v2120 = vmul.f32 %v1691, %v2119
        %v2121 = vsub.f32 1.0, %v2120
        %v2122 = vmul.f32 %v2119, %v2121
        %v2123 = vadd.f32 %v2119, %v2122
        %vm2124 = vweird.f32 %v1691
        %vm2125 = vweird.f32 %v2119
        %vm2126 = vmor %vm2124, %vm2125
        %v2127 = vsel %vm2126, %v2119, %v2123
        %v2128 = vand.u32 2147483647, %v1691
        %vm2129 = vcmp.eq.f32.partialorder %v2128, 8.507059e+37
        %v2130 = vand.u32 %v1691, 2147483648
        %v2131 = vor.u32 1.1754944e-38, %v2130
        %v2132 = vsel %vm2129, %v2131, %v2127
        %v2133 = vmul.f32 1.0, %v2132
        %v2134 = vrcp.pop %v1692
        %v2135 = vmul.f32 %v1692, %v2134
        %v2136 = vsub.f32 1.0, %v2135
        %v2137 = vmul.f32 %v2134, %v2136
        %v2138 = vadd.f32 %v2134, %v2137
        %vm2139 = vweird.f32 %v1692
        %vm2140 = vweird.f32 %v2134
        %vm2141 = vmor %vm2139, %vm2140
        %v2142 = vsel %vm2141, %v2134, %v2138
        %v2143 = vand.u32 2147483647, %v1692
        %vm2144 = vcmp.eq.f32.partialorder %v2143, 8.507059e+37
        %v2145 = vand.u32 %v1692, 2147483648
        %v2146 = vor.u32 1.1754944e-38, %v2145
        %v2147 = vsel %vm2144, %v2146, %v2142
        %v2148 = vmul.f32 1.0, %v2147
        %v2149 = vrcp.pop %v1693
        %v2150 = vmul.f32 %v1693, %v2149
        %v2151 = vsub.f32 1.0, %v2150
        %v2152 = vmul.f32 %v2149, %v2151
        %v2153 = vadd.f32 %v2149, %v2152
        %vm2154 = vweird.f32 %v1693
        %vm2155 = vweird.f32 %v2149
        %vm2156 = vmor %vm2154, %vm2155
        %v2157 = vsel %vm2156, %v2149, %v2153
        %v2158 = vand.u32 2147483647, %v1693
        %vm2159 = vcmp.eq.f32.partialorder %v2158, 8.507059e+37
        %v2160 = vand.u32 %v1693, 2147483648
        %v2161 = vor.u32 1.1754944e-38, %v2160
        %v2162 = vsel %vm2159, %v2161, %v2157
        %v2163 = vmul.f32 1.0, %v2162
        %v2164 = vrcp.pop %v1694
        %v2165 = vmul.f32 %v1694, %v2164
        %v2166 = vsub.f32 1.0, %v2165
        %v2167 = vmul.f32 %v2164, %v2166
        %v2168 = vadd.f32 %v2164, %v2167
        %vm2169 = vweird.f32 %v1694
        %vm2170 = vweird.f32 %v2164
        %vm2171 = vmor %vm2169, %vm2170
        %v2172 = vsel %vm2171, %v2164, %v2168
        %v2173 = vand.u32 2147483647, %v1694
        %vm2174 = vcmp.eq.f32.partialorder %v2173, 8.507059e+37
        %v2175 = vand.u32 %v1694, 2147483648
        %v2176 = vor.u32 1.1754944e-38, %v2175
        %v2177 = vsel %vm2174, %v2176, %v2172
        %v2178 = vmul.f32 1.0, %v2177
        %v2179 = vrcp.pop %v1695
        %v2180 = vmul.f32 %v1695, %v2179
        %v2181 = vsub.f32 1.0, %v2180
        %v2182 = vmul.f32 %v2179, %v2181
        %v2183 = vadd.f32 %v2179, %v2182
        %vm2184 = vweird.f32 %v1695
        %vm2185 = vweird.f32 %v2179
        %vm2186 = vmor %vm2184, %vm2185
        %v2187 = vsel %vm2186, %v2179, %v2183
        %v2188 = vand.u32 2147483647, %v1695
        %vm2189 = vcmp.eq.f32.partialorder %v2188, 8.507059e+37
        %v2190 = vand.u32 %v1695, 2147483648
        %v2191 = vor.u32 1.1754944e-38, %v2190
        %v2192 = vsel %vm2189, %v2191, %v2187
        %v2193 = vmul.f32 1.0, %v2192
        %v2194 = vrcp.pop %v1696
        %v2195 = vmul.f32 %v1696, %v2194
        %v2196 = vsub.f32 1.0, %v2195
        %v2197 = vmul.f32 %v2194, %v2196
        %v2198 = vadd.f32 %v2194, %v2197
        %vm2199 = vweird.f32 %v1696
        %vm2200 = vweird.f32 %v2194
        %vm2201 = vmor %vm2199, %vm2200
        %v2202 = vsel %vm2201, %v2194, %v2198
        %v2203 = vand.u32 2147483647, %v1696
        %vm2204 = vcmp.eq.f32.partialorder %v2203, 8.507059e+37
        %v2205 = vand.u32 %v1696, 2147483648
        %v2206 = vor.u32 1.1754944e-38, %v2205
        %v2207 = vsel %vm2204, %v2206, %v2202
        %v2208 = vmul.f32 1.0, %v2207
        %v2209 = vrcp.pop %v1697
        %v2210 = vmul.f32 %v1697, %v2209
        %v2211 = vsub.f32 1.0, %v2210
        %v2212 = vmul.f32 %v2209, %v2211
        %v2213 = vadd.f32 %v2209, %v2212
        %vm2214 = vweird.f32 %v1697
        %vm2215 = vweird.f32 %v2209
        %vm2216 = vmor %vm2214, %vm2215
        %v2217 = vsel %vm2216, %v2209, %v2213
        %v2218 = vand.u32 2147483647, %v1697
        %vm2219 = vcmp.eq.f32.partialorder %v2218, 8.507059e+37
        %v2220 = vand.u32 %v1697, 2147483648
        %v2221 = vor.u32 1.1754944e-38, %v2220
        %v2222 = vsel %vm2219, %v2221, %v2217
        %v2223 = vmul.f32 1.0, %v2222
        %v2224 = vrcp.pop %v1698
        %v2225 = vmul.f32 %v1698, %v2224
        %v2226 = vsub.f32 1.0, %v2225
        %v2227 = vmul.f32 %v2224, %v2226
        %v2228 = vadd.f32 %v2224, %v2227
        %vm2229 = vweird.f32 %v1698
        %vm2230 = vweird.f32 %v2224
        %vm2231 = vmor %vm2229, %vm2230
        %v2232 = vsel %vm2231, %v2224, %v2228
        %v2233 = vand.u32 2147483647, %v1698
        %vm2234 = vcmp.eq.f32.partialorder %v2233, 8.507059e+37
        %v2235 = vand.u32 %v1698, 2147483648
        %v2236 = vor.u32 1.1754944e-38, %v2235
        %v2237 = vsel %vm2234, %v2236, %v2232
        %v2238 = vmul.f32 1.0, %v2237
        %v2239 = vrcp.pop %v1699
        %v2240 = vmul.f32 %v1699, %v2239
        %v2241 = vsub.f32 1.0, %v2240
        %v2242 = vmul.f32 %v2239, %v2241
        %v2243 = vadd.f32 %v2239, %v2242
        %vm2244 = vweird.f32 %v1699
        %vm2245 = vweird.f32 %v2239
        %vm2246 = vmor %vm2244, %vm2245
        %v2247 = vsel %vm2246, %v2239, %v2243
        %v2248 = vand.u32 2147483647, %v1699
        %vm2249 = vcmp.eq.f32.partialorder %v2248, 8.507059e+37
        %v2250 = vand.u32 %v1699, 2147483648
        %v2251 = vor.u32 1.1754944e-38, %v2250
        %v2252 = vsel %vm2249, %v2251, %v2247
        %v2253 = vmul.f32 1.0, %v2252
        %v2254 = vrcp.pop %v1700
        %v2255 = vmul.f32 %v1700, %v2254
        %v2256 = vsub.f32 1.0, %v2255
        %v2257 = vmul.f32 %v2254, %v2256
        %v2258 = vadd.f32 %v2254, %v2257
        %vm2259 = vweird.f32 %v1700
        %vm2260 = vweird.f32 %v2254
        %vm2261 = vmor %vm2259, %vm2260
        %v2262 = vsel %vm2261, %v2254, %v2258
        %v2263 = vand.u32 2147483647, %v1700
        %vm2264 = vcmp.eq.f32.partialorder %v2263, 8.507059e+37
        %v2265 = vand.u32 %v1700, 2147483648
        %v2266 = vor.u32 1.1754944e-38, %v2265
        %v2267 = vsel %vm2264, %v2266, %v2262
        %v2268 = vmul.f32 1.0, %v2267
        %v2269 = vrcp.pop %v1701
        %v2270 = vmul.f32 %v1701, %v2269
        %v2271 = vsub.f32 1.0, %v2270
        %v2272 = vmul.f32 %v2269, %v2271
        %v2273 = vadd.f32 %v2269, %v2272
        %vm2274 = vweird.f32 %v1701
        %vm2275 = vweird.f32 %v2269
        %vm2276 = vmor %vm2274, %vm2275
        %v2277 = vsel %vm2276, %v2269, %v2273
        %v2278 = vand.u32 2147483647, %v1701
        %vm2279 = vcmp.eq.f32.partialorder %v2278, 8.507059e+37
        %v2280 = vand.u32 %v1701, 2147483648
        %v2281 = vor.u32 1.1754944e-38, %v2280
        %v2282 = vsel %vm2279, %v2281, %v2277
        %v2283 = vmul.f32 1.0, %v2282
        %v2284 = vrcp.pop %v1702
        %v2285 = vmul.f32 %v1702, %v2284
        %v2286 = vsub.f32 1.0, %v2285
        %v2287 = vmul.f32 %v2284, %v2286
        %v2288 = vadd.f32 %v2284, %v2287
        %vm2289 = vweird.f32 %v1702
        %vm2290 = vweird.f32 %v2284
        %vm2291 = vmor %vm2289, %vm2290
        %v2292 = vsel %vm2291, %v2284, %v2288
        %v2293 = vand.u32 2147483647, %v1702
        %vm2294 = vcmp.eq.f32.partialorder %v2293, 8.507059e+37
        %v2295 = vand.u32 %v1702, 2147483648
        %v2296 = vor.u32 1.1754944e-38, %v2295
        %v2297 = vsel %vm2294, %v2296, %v2292
        %v2298 = vmul.f32 1.0, %v2297
        %v2299 = vrcp.pop %v1703
        %v2300 = vmul.f32 %v1703, %v2299
        %v2301 = vsub.f32 1.0, %v2300
        %v2302 = vmul.f32 %v2299, %v2301
        %v2303 = vadd.f32 %v2299, %v2302
        %vm2304 = vweird.f32 %v1703
        %vm2305 = vweird.f32 %v2299
        %vm2306 = vmor %vm2304, %vm2305
        %v2307 = vsel %vm2306, %v2299, %v2303
        %v2308 = vand.u32 2147483647, %v1703
        %vm2309 = vcmp.eq.f32.partialorder %v2308, 8.507059e+37
        %v2310 = vand.u32 %v1703, 2147483648
        %v2311 = vor.u32 1.1754944e-38, %v2310
        %v2312 = vsel %vm2309, %v2311, %v2307
        %v2313 = vmul.f32 1.0, %v2312
        %v2314 = vrcp.pop %v1704
        %v2315 = vmul.f32 %v1704, %v2314
        %v2316 = vsub.f32 1.0, %v2315
        %v2317 = vmul.f32 %v2314, %v2316
        %v2318 = vadd.f32 %v2314, %v2317
        %vm2319 = vweird.f32 %v1704
        %vm2320 = vweird.f32 %v2314
        %vm2321 = vmor %vm2319, %vm2320
        %v2322 = vsel %vm2321, %v2314, %v2318
        %v2323 = vand.u32 2147483647, %v1704
        %vm2324 = vcmp.eq.f32.partialorder %v2323, 8.507059e+37
        %v2325 = vand.u32 %v1704, 2147483648
        %v2326 = vor.u32 1.1754944e-38, %v2325
        %v2327 = vsel %vm2324, %v2326, %v2322
        %v2328 = vmul.f32 1.0, %v2327
        %v2329 = vrcp.pop %v1705
        %v2330 = vmul.f32 %v1705, %v2329
        %v2331 = vsub.f32 1.0, %v2330
        %v2332 = vmul.f32 %v2329, %v2331
        %v2333 = vadd.f32 %v2329, %v2332
        %vm2334 = vweird.f32 %v1705
        %vm2335 = vweird.f32 %v2329
        %vm2336 = vmor %vm2334, %vm2335
        %v2337 = vsel %vm2336, %v2329, %v2333
        %v2338 = vand.u32 2147483647, %v1705
        %vm2339 = vcmp.eq.f32.partialorder %v2338, 8.507059e+37
        %v2340 = vand.u32 %v1705, 2147483648
        %v2341 = vor.u32 1.1754944e-38, %v2340
        %v2342 = vsel %vm2339, %v2341, %v2337
        %v2343 = vmul.f32 1.0, %v2342
        %v2344 = vrcp.pop %v1706
        %v2345 = vmul.f32 %v1706, %v2344
        %v2346 = vsub.f32 1.0, %v2345
        %v2347 = vmul.f32 %v2344, %v2346
        %v2348 = vadd.f32 %v2344, %v2347
        %vm2349 = vweird.f32 %v1706
        %vm2350 = vweird.f32 %v2344
        %vm2351 = vmor %vm2349, %vm2350
        %v2352 = vsel %vm2351, %v2344, %v2348
        %v2353 = vand.u32 2147483647, %v1706
        %vm2354 = vcmp.eq.f32.partialorder %v2353, 8.507059e+37
        %v2355 = vand.u32 %v1706, 2147483648
        %v2356 = vor.u32 1.1754944e-38, %v2355
        %v2357 = vsel %vm2354, %v2356, %v2352
        %v2358 = vmul.f32 1.0, %v2357
        %v2359 = vrcp.pop %v1707
        %v2360 = vmul.f32 %v1707, %v2359
        %v2361 = vsub.f32 1.0, %v2360
        %v2362 = vmul.f32 %v2359, %v2361
        %v2363 = vadd.f32 %v2359, %v2362
        %vm2364 = vweird.f32 %v1707
        %vm2365 = vweird.f32 %v2359
        %vm2366 = vmor %vm2364, %vm2365
        %v2367 = vsel %vm2366, %v2359, %v2363
        %v2368 = vand.u32 2147483647, %v1707
        %vm2369 = vcmp.eq.f32.partialorder %v2368, 8.507059e+37
        %v2370 = vand.u32 %v1707, 2147483648
        %v2371 = vor.u32 1.1754944e-38, %v2370
        %v2372 = vsel %vm2369, %v2371, %v2367
        %v2373 = vmul.f32 1.0, %v2372
        %v2374 = vrcp.pop %v1708
        %v2375 = vmul.f32 %v1708, %v2374
        %v2376 = vsub.f32 1.0, %v2375
        %v2377 = vmul.f32 %v2374, %v2376
        %v2378 = vadd.f32 %v2374, %v2377
        %vm2379 = vweird.f32 %v1708
        %vm2380 = vweird.f32 %v2374
        %vm2381 = vmor %vm2379, %vm2380
        %v2382 = vsel %vm2381, %v2374, %v2378
        %v2383 = vand.u32 2147483647, %v1708
        %vm2384 = vcmp.eq.f32.partialorder %v2383, 8.507059e+37
        %v2385 = vand.u32 %v1708, 2147483648
        %v2386 = vor.u32 1.1754944e-38, %v2385
        %v2387 = vsel %vm2384, %v2386, %v2382
        %v2388 = vmul.f32 1.0, %v2387
        %v2389 = vrcp.pop %v1709
        %v2390 = vmul.f32 %v1709, %v2389
        %v2391 = vsub.f32 1.0, %v2390
        %v2392 = vmul.f32 %v2389, %v2391
        %v2393 = vadd.f32 %v2389, %v2392
        %vm2394 = vweird.f32 %v1709
        %vm2395 = vweird.f32 %v2389
        %vm2396 = vmor %vm2394, %vm2395
        %v2397 = vsel %vm2396, %v2389, %v2393
        %v2398 = vand.u32 2147483647, %v1709
        %vm2399 = vcmp.eq.f32.partialorder %v2398, 8.507059e+37
        %v2400 = vand.u32 %v1709, 2147483648
        %v2401 = vor.u32 1.1754944e-38, %v2400
        %v2402 = vsel %vm2399, %v2401, %v2397
        %v2403 = vmul.f32 1.0, %v2402
        %v2404 = vrcp.pop %v1710
        %v2405 = vmul.f32 %v1710, %v2404
        %v2406 = vsub.f32 1.0, %v2405
        %v2407 = vmul.f32 %v2404, %v2406
        %v2408 = vadd.f32 %v2404, %v2407
        %vm2409 = vweird.f32 %v1710
        %vm2410 = vweird.f32 %v2404
        %vm2411 = vmor %vm2409, %vm2410
        %v2412 = vsel %vm2411, %v2404, %v2408
        %v2413 = vand.u32 2147483647, %v1710
        %vm2414 = vcmp.eq.f32.partialorder %v2413, 8.507059e+37
        %v2415 = vand.u32 %v1710, 2147483648
        %v2416 = vor.u32 1.1754944e-38, %v2415
        %v2417 = vsel %vm2414, %v2416, %v2412
        %v2418 = vmul.f32 1.0, %v2417
        %v2419 = vrcp.pop %v1711
        %v2420 = vmul.f32 %v1711, %v2419
        %v2421 = vsub.f32 1.0, %v2420
        %v2422 = vmul.f32 %v2419, %v2421
        %v2423 = vadd.f32 %v2419, %v2422
        %vm2424 = vweird.f32 %v1711
        %vm2425 = vweird.f32 %v2419
        %vm2426 = vmor %vm2424, %vm2425
        %v2427 = vsel %vm2426, %v2419, %v2423
        %v2428 = vand.u32 2147483647, %v1711
        %vm2429 = vcmp.eq.f32.partialorder %v2428, 8.507059e+37
        %v2430 = vand.u32 %v1711, 2147483648
        %v2431 = vor.u32 1.1754944e-38, %v2430
        %v2432 = vsel %vm2429, %v2431, %v2427
        %v2433 = vmul.f32 1.0, %v2432
        %v2434 = vrcp.pop %v1712
        %v2435 = vmul.f32 %v1712, %v2434
        %v2436 = vsub.f32 1.0, %v2435
        %v2437 = vmul.f32 %v2434, %v2436
        %v2438 = vadd.f32 %v2434, %v2437
        %vm2439 = vweird.f32 %v1712
        %vm2440 = vweird.f32 %v2434
        %vm2441 = vmor %vm2439, %vm2440
        %v2442 = vsel %vm2441, %v2434, %v2438
        %v2443 = vand.u32 2147483647, %v1712
        %vm2444 = vcmp.eq.f32.partialorder %v2443, 8.507059e+37
        %v2445 = vand.u32 %v1712, 2147483648
        %v2446 = vor.u32 1.1754944e-38, %v2445
        %v2447 = vsel %vm2444, %v2446, %v2442
        %v2448 = vmul.f32 1.0, %v2447
        %v2449 = vrcp.pop %v1713
        %v2450 = vmul.f32 %v1713, %v2449
        %v2451 = vsub.f32 1.0, %v2450
        %v2452 = vmul.f32 %v2449, %v2451
        %v2453 = vadd.f32 %v2449, %v2452
        %vm2454 = vweird.f32 %v1713
        %vm2455 = vweird.f32 %v2449
        %vm2456 = vmor %vm2454, %vm2455
        %v2457 = vsel %vm2456, %v2449, %v2453
        %v2458 = vand.u32 2147483647, %v1713
        %vm2459 = vcmp.eq.f32.partialorder %v2458, 8.507059e+37
        %v2460 = vand.u32 %v1713, 2147483648
        %v2461 = vor.u32 1.1754944e-38, %v2460
        %v2462 = vsel %vm2459, %v2461, %v2457
        %v2463 = vmul.f32 1.0, %v2462
        %v2464 = vrcp.pop %v1714
        %v2465 = vmul.f32 %v1714, %v2464
        %v2466 = vsub.f32 1.0, %v2465
        %v2467 = vmul.f32 %v2464, %v2466
        %v2468 = vadd.f32 %v2464, %v2467
        %vm2469 = vweird.f32 %v1714
        %vm2470 = vweird.f32 %v2464
        %vm2471 = vmor %vm2469, %vm2470
        %v2472 = vsel %vm2471, %v2464, %v2468
        %v2473 = vand.u32 2147483647, %v1714
        %vm2474 = vcmp.eq.f32.partialorder %v2473, 8.507059e+37
        %v2475 = vand.u32 %v1714, 2147483648
        %v2476 = vor.u32 1.1754944e-38, %v2475
        %v2477 = vsel %vm2474, %v2476, %v2472
        %v2478 = vmul.f32 1.0, %v2477
        %v2479 = vrcp.pop %v1715
        %v2480 = vmul.f32 %v1715, %v2479
        %v2481 = vsub.f32 1.0, %v2480
        %v2482 = vmul.f32 %v2479, %v2481
        %v2483 = vadd.f32 %v2479, %v2482
        %vm2484 = vweird.f32 %v1715
        %vm2485 = vweird.f32 %v2479
        %vm2486 = vmor %vm2484, %vm2485
        %v2487 = vsel %vm2486, %v2479, %v2483
        %v2488 = vand.u32 2147483647, %v1715
        %vm2489 = vcmp.eq.f32.partialorder %v2488, 8.507059e+37
        %v2490 = vand.u32 %v1715, 2147483648
        %v2491 = vor.u32 1.1754944e-38, %v2490
        %v2492 = vsel %vm2489, %v2491, %v2487
        %v2493 = vmul.f32 1.0, %v2492
        %v2494 = vrcp.pop %v1716
        %v2495 = vmul.f32 %v1716, %v2494
        %v2496 = vsub.f32 1.0, %v2495
        %v2497 = vmul.f32 %v2494, %v2496
        %v2498 = vadd.f32 %v2494, %v2497
        %vm2499 = vweird.f32 %v1716
        %vm2500 = vweird.f32 %v2494
        %vm2501 = vmor %vm2499, %vm2500
        %v2502 = vsel %vm2501, %v2494, %v2498
        %v2503 = vand.u32 2147483647, %v1716
        %vm2504 = vcmp.eq.f32.partialorder %v2503, 8.507059e+37
        %v2505 = vand.u32 %v1716, 2147483648
        %v2506 = vor.u32 1.1754944e-38, %v2505
        %v2507 = vsel %vm2504, %v2506, %v2502
        %v2508 = vmul.f32 1.0, %v2507
        %v2509 = vrcp.pop %v1717
        %v2510 = vmul.f32 %v1717, %v2509
        %v2511 = vsub.f32 1.0, %v2510
        %v2512 = vmul.f32 %v2509, %v2511
        %v2513 = vadd.f32 %v2509, %v2512
        %vm2514 = vweird.f32 %v1717
        %vm2515 = vweird.f32 %v2509
        %vm2516 = vmor %vm2514, %vm2515
        %v2517 = vsel %vm2516, %v2509, %v2513
        %v2518 = vand.u32 2147483647, %v1717
        %vm2519 = vcmp.eq.f32.partialorder %v2518, 8.507059e+37
        %v2520 = vand.u32 %v1717, 2147483648
        %v2521 = vor.u32 1.1754944e-38, %v2520
        %v2522 = vsel %vm2519, %v2521, %v2517
        %v2523 = vmul.f32 1.0, %v2522
        %v2524 = vrcp.pop %v1718
        %v2525 = vmul.f32 %v1718, %v2524
        %v2526 = vsub.f32 1.0, %v2525
        %v2527 = vmul.f32 %v2524, %v2526
        %v2528 = vadd.f32 %v2524, %v2527
        %vm2529 = vweird.f32 %v1718
        %vm2530 = vweird.f32 %v2524
        %vm2531 = vmor %vm2529, %vm2530
        %v2532 = vsel %vm2531, %v2524, %v2528
        %v2533 = vand.u32 2147483647, %v1718
        %vm2534 = vcmp.eq.f32.partialorder %v2533, 8.507059e+37
        %v2535 = vand.u32 %v1718, 2147483648
        %v2536 = vor.u32 1.1754944e-38, %v2535
        %v2537 = vsel %vm2534, %v2536, %v2532
        %v2538 = vmul.f32 1.0, %v2537
        %v2539 = vrcp.pop %v1719
        %v2540 = vmul.f32 %v1719, %v2539
        %v2541 = vsub.f32 1.0, %v2540
        %v2542 = vmul.f32 %v2539, %v2541
        %v2543 = vadd.f32 %v2539, %v2542
        %vm2544 = vweird.f32 %v1719
        %vm2545 = vweird.f32 %v2539
        %vm2546 = vmor %vm2544, %vm2545
        %v2547 = vsel %vm2546, %v2539, %v2543
        %v2548 = vand.u32 2147483647, %v1719
        %vm2549 = vcmp.eq.f32.partialorder %v2548, 8.507059e+37
        %v2550 = vand.u32 %v1719, 2147483648
        %v2551 = vor.u32 1.1754944e-38, %v2550
        %v2552 = vsel %vm2549, %v2551, %v2547
        %v2553 = vmul.f32 1.0, %v2552
        %v2554 = vrcp.pop %v1720
        %v2555 = vmul.f32 %v1720, %v2554
        %v2556 = vsub.f32 1.0, %v2555
        %v2557 = vmul.f32 %v2554, %v2556
        %v2558 = vadd.f32 %v2554, %v2557
        %vm2559 = vweird.f32 %v1720
        %vm2560 = vweird.f32 %v2554
        %vm2561 = vmor %vm2559, %vm2560
        %v2562 = vsel %vm2561, %v2554, %v2558
        %v2563 = vand.u32 2147483647, %v1720
        %vm2564 = vcmp.eq.f32.partialorder %v2563, 8.507059e+37
        %v2565 = vand.u32 %v1720, 2147483648
        %v2566 = vor.u32 1.1754944e-38, %v2565
        %v2567 = vsel %vm2564, %v2566, %v2562
        %v2568 = vmul.f32 1.0, %v2567
        %v2569 = vrcp.pop %v1721
        %v2570 = vmul.f32 %v1721, %v2569
        %v2571 = vsub.f32 1.0, %v2570
        %v2572 = vmul.f32 %v2569, %v2571
        %v2573 = vadd.f32 %v2569, %v2572
        %vm2574 = vweird.f32 %v1721
        %vm2575 = vweird.f32 %v2569
        %vm2576 = vmor %vm2574, %vm2575
        %v2577 = vsel %vm2576, %v2569, %v2573
        %v2578 = vand.u32 2147483647, %v1721
        %vm2579 = vcmp.eq.f32.partialorder %v2578, 8.507059e+37
        %v2580 = vand.u32 %v1721, 2147483648
        %v2581 = vor.u32 1.1754944e-38, %v2580
        %v2582 = vsel %vm2579, %v2581, %v2577
        %v2583 = vmul.f32 1.0, %v2582
        %v2584 = vrcp.pop %v1722
        %v2585 = vmul.f32 %v1722, %v2584
        %v2586 = vsub.f32 1.0, %v2585
        %v2587 = vmul.f32 %v2584, %v2586
        %v2588 = vadd.f32 %v2584, %v2587
        %vm2589 = vweird.f32 %v1722
        %vm2590 = vweird.f32 %v2584
        %vm2591 = vmor %vm2589, %vm2590
        %v2592 = vsel %vm2591, %v2584, %v2588
        %v2593 = vand.u32 2147483647, %v1722
        %vm2594 = vcmp.eq.f32.partialorder %v2593, 8.507059e+37
        %v2595 = vand.u32 %v1722, 2147483648
        %v2596 = vor.u32 1.1754944e-38, %v2595
        %v2597 = vsel %vm2594, %v2596, %v2592
        %v2598 = vmul.f32 1.0, %v2597
        %v2599 = vrcp.pop %v1723
        %v2600 = vmul.f32 %v1723, %v2599
        %v2601 = vsub.f32 1.0, %v2600
        %v2602 = vmul.f32 %v2599, %v2601
        %v2603 = vadd.f32 %v2599, %v2602
        %vm2604 = vweird.f32 %v1723
        %vm2605 = vweird.f32 %v2599
        %vm2606 = vmor %vm2604, %vm2605
        %v2607 = vsel %vm2606, %v2599, %v2603
        %v2608 = vand.u32 2147483647, %v1723
        %vm2609 = vcmp.eq.f32.partialorder %v2608, 8.507059e+37
        %v2610 = vand.u32 %v1723, 2147483648
        %v2611 = vor.u32 1.1754944e-38, %v2610
        %v2612 = vsel %vm2609, %v2611, %v2607
        %v2613 = vmul.f32 1.0, %v2612
        %v2614 = vrcp.pop %v1724
        %v2615 = vmul.f32 %v1724, %v2614
        %v2616 = vsub.f32 1.0, %v2615
        %v2617 = vmul.f32 %v2614, %v2616
        %v2618 = vadd.f32 %v2614, %v2617
        %vm2619 = vweird.f32 %v1724
        %vm2620 = vweird.f32 %v2614
        %vm2621 = vmor %vm2619, %vm2620
        %v2622 = vsel %vm2621, %v2614, %v2618
        %v2623 = vand.u32 2147483647, %v1724
        %vm2624 = vcmp.eq.f32.partialorder %v2623, 8.507059e+37
        %v2625 = vand.u32 %v1724, 2147483648
        %v2626 = vor.u32 1.1754944e-38, %v2625
        %v2627 = vsel %vm2624, %v2626, %v2622
        %v2628 = vmul.f32 1.0, %v2627
        %v2629 = vrcp.pop %v1725
        %v2630 = vmul.f32 %v1725, %v2629
        %v2631 = vsub.f32 1.0, %v2630
        %v2632 = vmul.f32 %v2629, %v2631
        %v2633 = vadd.f32 %v2629, %v2632
        %vm2634 = vweird.f32 %v1725
        %vm2635 = vweird.f32 %v2629
        %vm2636 = vmor %vm2634, %vm2635
        %v2637 = vsel %vm2636, %v2629, %v2633
        %v2638 = vand.u32 2147483647, %v1725
        %vm2639 = vcmp.eq.f32.partialorder %v2638, 8.507059e+37
        %v2640 = vand.u32 %v1725, 2147483648
        %v2641 = vor.u32 1.1754944e-38, %v2640
        %v2642 = vsel %vm2639, %v2641, %v2637
        %v2643 = vmul.f32 1.0, %v2642
        %v2644 = vrcp.pop %v1726
        %v2645 = vmul.f32 %v1726, %v2644
        %v2646 = vsub.f32 1.0, %v2645
        %v2647 = vmul.f32 %v2644, %v2646
        %v2648 = vadd.f32 %v2644, %v2647
        %vm2649 = vweird.f32 %v1726
        %vm2650 = vweird.f32 %v2644
        %vm2651 = vmor %vm2649, %vm2650
        %v2652 = vsel %vm2651, %v2644, %v2648
        %v2653 = vand.u32 2147483647, %v1726
        %vm2654 = vcmp.eq.f32.partialorder %v2653, 8.507059e+37
        %v2655 = vand.u32 %v1726, 2147483648
        %v2656 = vor.u32 1.1754944e-38, %v2655
        %v2657 = vsel %vm2654, %v2656, %v2652
        %v2658 = vmul.f32 1.0, %v2657
        %v2659 = vrcp.pop %v1727
        %v2660 = vmul.f32 %v1727, %v2659
        %v2661 = vsub.f32 1.0, %v2660
        %v2662 = vmul.f32 %v2659, %v2661
        %v2663 = vadd.f32 %v2659, %v2662
        %vm2664 = vweird.f32 %v1727
        %vm2665 = vweird.f32 %v2659
        %vm2666 = vmor %vm2664, %vm2665
        %v2667 = vsel %vm2666, %v2659, %v2663
        %v2668 = vand.u32 2147483647, %v1727
        %vm2669 = vcmp.eq.f32.partialorder %v2668, 8.507059e+37
        %v2670 = vand.u32 %v1727, 2147483648
        %v2671 = vor.u32 1.1754944e-38, %v2670
        %v2672 = vsel %vm2669, %v2671, %v2667
        %v2673 = vmul.f32 1.0, %v2672
        %v2674 = vrcp.pop %v1728
        %v2675 = vmul.f32 %v1728, %v2674
        %v2676 = vsub.f32 1.0, %v2675
        %v2677 = vmul.f32 %v2674, %v2676
        %v2678 = vadd.f32 %v2674, %v2677
        %vm2679 = vweird.f32 %v1728
        %vm2680 = vweird.f32 %v2674
        %vm2681 = vmor %vm2679, %vm2680
        %v2682 = vsel %vm2681, %v2674, %v2678
        %v2683 = vand.u32 2147483647, %v1728
        %vm2684 = vcmp.eq.f32.partialorder %v2683, 8.507059e+37
        %v2685 = vand.u32 %v1728, 2147483648
        %v2686 = vor.u32 1.1754944e-38, %v2685
        %v2687 = vsel %vm2684, %v2686, %v2682
        %v2688 = vmul.f32 1.0, %v2687
        %2689 = vst [vmem:[%s272] sm:$0xff] %v1743
        %2690 = vst [vmem:[%s272 + $0x8] sm:$0xff] %v1758
        %2691 = vst [vmem:[%s272 + $0x10] sm:$0xff] %v1773
        %2692 = vst [vmem:[%s272 + $0x18] sm:$0xff] %v1788
        %2693 = vst [vmem:[%s272 + $0x20] sm:$0xff] %v1803
        %2694 = vst [vmem:[%s272 + $0x28] sm:$0xff] %v1818
        %2695 = vst [vmem:[%s272 + $0x30] sm:$0xff] %v1833
        %2696 = vst [vmem:[%s272 + $0x38] sm:$0xff] %v1848
        %2697 = vst [vmem:[%s272 + $0x40] sm:$0xff] %v1863
        %2698 = vst [vmem:[%s272 + $0x48] sm:$0xff] %v1878
        %2699 = vst [vmem:[%s272 + $0x50] sm:$0xff] %v1893
        %2700 = vst [vmem:[%s272 + $0x58] sm:$0xff] %v1908
        %2701 = vst [vmem:[%s272 + $0x60] sm:$0xff] %v1923
        %2702 = vst [vmem:[%s272 + $0x68] sm:$0xff] %v1938
        %2703 = vst [vmem:[%s272 + $0x70] sm:$0xff] %v1953
        %2704 = vst [vmem:[%s272 + $0x78] sm:$0xff] %v1968
        %2705 = vst [vmem:[%s272 + $0x80] sm:$0xff] %v1983
        %2706 = vst [vmem:[%s272 + $0x88] sm:$0xff] %v1998
        %2707 = vst [vmem:[%s272 + $0x90] sm:$0xff] %v2013
        %2708 = vst [vmem:[%s272 + $0x98] sm:$0xff] %v2028
        %2709 = vst [vmem:[%s272 + $0xa0] sm:$0xff] %v2043
        %2710 = vst [vmem:[%s272 + $0xa8] sm:$0xff] %v2058
        %2711 = vst [vmem:[%s272 + $0xb0] sm:$0xff] %v2073
        %2712 = vst [vmem:[%s272 + $0xb8] sm:$0xff] %v2088
        %2713 = vst [vmem:[%s272 + $0xc0] sm:$0xff] %v2103
        %2714 = vst [vmem:[%s272 + $0xc8] sm:$0xff] %v2118
        %2715 = vst [vmem:[%s272 + $0xd0] sm:$0xff] %v2133
        %2716 = vst [vmem:[%s272 + $0xd8] sm:$0xff] %v2148
        %2717 = vst [vmem:[%s272 + $0xe0] sm:$0xff] %v2163
        %2718 = vst [vmem:[%s272 + $0xe8] sm:$0xff] %v2178
        %2719 = vst [vmem:[%s272 + $0xf0] sm:$0xff] %v2193
        %2720 = vst [vmem:[%s272 + $0xf8] sm:$0xff] %v2208
        %2721 = vst [vmem:[%s272 + $0x100] sm:$0xff] %v2223
        %2722 = vst [vmem:[%s272 + $0x108] sm:$0xff] %v2238
        %2723 = vst [vmem:[%s272 + $0x110] sm:$0xff] %v2253
        %2724 = vst [vmem:[%s272 + $0x118] sm:$0xff] %v2268
        %2725 = vst [vmem:[%s272 + $0x120] sm:$0xff] %v2283
        %2726 = vst [vmem:[%s272 + $0x128] sm:$0xff] %v2298
        %2727 = vst [vmem:[%s272 + $0x130] sm:$0xff] %v2313
        %2728 = vst [vmem:[%s272 + $0x138] sm:$0xff] %v2328
        %2729 = vst [vmem:[%s272 + $0x140] sm:$0xff] %v2343
        %2730 = vst [vmem:[%s272 + $0x148] sm:$0xff] %v2358
        %2731 = vst [vmem:[%s272 + $0x150] sm:$0xff] %v2373
        %2732 = vst [vmem:[%s272 + $0x158] sm:$0xff] %v2388
        %2733 = vst [vmem:[%s272 + $0x160] sm:$0xff] %v2403
        %2734 = vst [vmem:[%s272 + $0x168] sm:$0xff] %v2418
        %2735 = vst [vmem:[%s272 + $0x170] sm:$0xff] %v2433
        %2736 = vst [vmem:[%s272 + $0x178] sm:$0xff] %v2448
        %2737 = vst [vmem:[%s272 + $0x180] sm:$0xff] %v2463
        %2738 = vst [vmem:[%s272 + $0x188] sm:$0xff] %v2478
        %2739 = vst [vmem:[%s272 + $0x190] sm:$0xff] %v2493
        %2740 = vst [vmem:[%s272 + $0x198] sm:$0xff] %v2508
        %2741 = vst [vmem:[%s272 + $0x1a0] sm:$0xff] %v2523
        %2742 = vst [vmem:[%s272 + $0x1a8] sm:$0xff] %v2538
        %2743 = vst [vmem:[%s272 + $0x1b0] sm:$0xff] %v2553
        %2744 = vst [vmem:[%s272 + $0x1b8] sm:$0xff] %v2568
        %2745 = vst [vmem:[%s272 + $0x1c0] sm:$0xff] %v2583
        %2746 = vst [vmem:[%s272 + $0x1c8] sm:$0xff] %v2598
        %2747 = vst [vmem:[%s272 + $0x1d0] sm:$0xff] %v2613
        %2748 = vst [vmem:[%s272 + $0x1d8] sm:$0xff] %v2628
        %2749 = vst [vmem:[%s272 + $0x1e0] sm:$0xff] %v2643
        %2750 = vst [vmem:[%s272 + $0x1e8] sm:$0xff] %v2658
        %2751 = vst [vmem:[%s272 + $0x1f0] sm:$0xff] %v2673
        %2752 = vst [vmem:[%s272 + $0x1f8] sm:$0xff] %v2688
        %s2753 = sand.u32 %s181, 1
        %s2754 = scalar_lea.sflag [#allocation3], %s2753
        %s2755 = sand.u32 %s181, 1
        %s2756 = smul.addr %s2755, 512
        %s2757 = scalar_lea.vmem [#allocation2], %s2756
        // Predicated region
        $region49: #{tpu_custom_call.1} parent=47 // pred_check
          %p2758 = pneg %p191
        $region50: #{tpu_custom_call.1} parent=47 // pred_check_branch
          %2760 = sbr.rel (%p2758) target = $region52
        $region51: #{tpu_custom_call.1} parent=47 // pred_region
          %s2761 = smul.u32 64, %s21
          %2763 = vsyncadd %s2754, 0
          %s2764 = smul.addr %s2761, 8
          %s2765 = scalar_lea.hbm %s7, %s2764
          %s2766 = sshll.u32 %s2757, 4
          %s2767 = int_to_ptr.vmem [resolvable:$true] %s2766
          %s2768 = sshll.u32 %s2765, 4
          %s2769 = int_to_ptr.hbm [resolvable:$true] %s2768
          %2774 = dma.vmem_to_hbm [thread:$0]  %s2767, 8192, %s2769, %s2754, 128, 128, 8
        $region52: #{tpu_custom_call.1} parent=47 // pred_fallthru
          _
      $region48: #{tpu_custom_call.1} parent=5 // pred_fallthru
        _
      %p2775 = scmp.le.s32.totalorder 2, %s16
      // Predicated region
      $region53: #{tpu_custom_call.1} parent=5 // pred_check
        %p2776 = pneg %p2775
      $region54: #{tpu_custom_call.1} parent=5 // pred_check_branch
        %2778 = sbr.rel (%p2776) target = $region56
      $region55: #{tpu_custom_call.1} parent=5 // pred_region
        %s2779 = ssub.s32 %s16, 2
        // Predicated region
        $region57: #{tpu_custom_call.1} parent=55 // pred_check
          %p2780 = pneg %p197
        $region58: #{tpu_custom_call.1} parent=55 // pred_check_branch
          %2782 = sbr.rel (%p2780) target = $region60
        $region59: #{tpu_custom_call.1} parent=55 // pred_region
          %s2783 = sand.u32 %s182, 1
          %s2784 = scalar_lea.sflag [#allocation3], %s2783
          %s2785 = sand.u32 %s182, 1
          %s2786 = smul.addr %s2785, 512
          %s2787 = scalar_lea.vmem [#allocation2], %s2786
          %2789 = dma.done %s2784, 8192
        $region60: #{tpu_custom_call.1} parent=55 // pred_fallthru
          _
      $region56: #{tpu_custom_call.1} parent=5 // pred_fallthru
        _
    $region6: #{tpu_custom_call.1} parent=1 // loop_footer
      %s20 = sadd.s32 1, %s16
    $region7: #{tpu_custom_call.1} parent=1 // loop_footer_branch
      %15 = sbr.rel target = $region3
    $region8: #{tpu_custom_call.1} parent=1 // loop_exit
      _
    %2790 = vsyncpa [#allocation3], 1
    %s2791 = scalar_lea.sflag [#allocation3], 1
    %2792 = vsyncpa %s2791, 1

</llo_original>
